<compile_context>
chip_gen: v5e
topology: v5e:2x2
jax: 0.10.0
libtpu: 0.0.40
codegen_flags: <defaults>
</compile_context>

<pallas_src>
import math

import jax
import jax.numpy as jnp
from jax.experimental import pallas as pl
from jax.experimental.pallas import tpu as pltpu


# ---------------------------------------------------------------------------
# Kernel
# ---------------------------------------------------------------------------

def _make_layer_kernel(apply_relu: bool, compute_dtype):
    """One SAGEConv (mean) layer, K-blocked over neighbors, fused finalize."""

    def kernel(a_ref, x_k_ref, x_i_ref, inv_deg_ref, ws_ref, wn_ref, b_ref,
               o_ref, acc_ref):
        k = pl.program_id(1)

        @pl.when(k == 0)
        def _init():
            acc_ref[...] = jnp.zeros_like(acc_ref)

        # Accumulate neighbor-feature sums: bf16 x bf16 MXU matmul with f32
        # accumulation.  A is the raw 0/1 adjacency (exact in bf16); the mean
        # normalization is deferred to the finalize step.
        acc_ref[...] += jnp.dot(a_ref[...], x_k_ref[...],
                                preferred_element_type=jnp.float32)

        @pl.when(k == pl.num_programs(1) - 1)
        def _finalize():
            # mean = inv_deg * sum, done in f32; zero-in-degree rows have
            # acc == 0 so any inv_deg value keeps them at 0.
            neigh = (acc_ref[...] * inv_deg_ref[...]).astype(compute_dtype)
            # Two MXU dots against separate weight refs (no [x | neigh] concat
            # copy); bias / ReLU stay in f32 on the VPU.
            h = jnp.dot(x_i_ref[...], ws_ref[...],
                        preferred_element_type=jnp.float32)
            h = h + jnp.dot(neigh, wn_ref[...],
                            preferred_element_type=jnp.float32)
            h = h + b_ref[...]
            if apply_relu:
                h = jnp.maximum(h, 0.0)
            o_ref[...] = h.astype(o_ref.dtype)

    return kernel


def _sage_layer(adj, x, inv_deg, w_self, w_neigh, bias, *, apply_relu,
                tm, tk, out_dtype):
    """One tiled SAGEConv layer on padded inputs.

    adj:     (Np, Np)  bf16 raw 0/1 adjacency (row i = dst, col j = src)
    x:       (Np, Fin) bf16 node features            (Fin multiple of 128)
    inv_deg: (Np, 1)   f32  1 / max(in_degree, 1)
    w_self, w_neigh: (Fin, Fout) bf16                (Fout multiple of 128)
    bias:    (1, Fout) f32
    """
    n_pad, f_in = x.shape
    f_out = w_self.shape[1]
    assert n_pad % tm == 0 and n_pad % tk == 0
    grid = (n_pad // tm, n_pad // tk)

    n_row_blocks = grid[0]
    flops = 2 * n_pad * n_pad * f_in + 2 * 2 * n_pad * f_in * f_out
    bytes_accessed = (2 * n_pad * n_pad                      # A (bf16)
                      + 2 * n_pad * f_in * (n_row_blocks + 1)  # x_k restreams + x_i
                      + 2 * 2 * f_in * f_out + 4 * f_out       # weights + bias
                      + 4 * n_pad                              # inv_deg
                      + jnp.dtype(out_dtype).itemsize * n_pad * f_out)

    kernel = _make_layer_kernel(apply_relu, x.dtype)
    return pl.pallas_call(
        kernel,
        out_shape=jax.ShapeDtypeStruct((n_pad, f_out), out_dtype),
        grid_spec=pltpu.PrefetchScalarGridSpec(
            num_scalar_prefetch=0,
            grid=grid,
            in_specs=[
                # adjacency tile: rows = dst block i, cols = src block k
                pl.BlockSpec((tm, tk), lambda i, k: (i, k)),
                # neighbor features for the K block
                pl.BlockSpec((tk, f_in), lambda i, k: (k, 0)),
                # self features for the row block (re-fetched only when i changes)
                pl.BlockSpec((tm, f_in), lambda i, k: (i, 0)),
                # per-row 1/deg for the deferred mean normalization
                pl.BlockSpec((tm, 1), lambda i, k: (i, 0)),
                # resident weights + bias
                pl.BlockSpec((f_in, f_out), lambda i, k: (0, 0)),
                pl.BlockSpec((f_in, f_out), lambda i, k: (0, 0)),
                pl.BlockSpec((1, f_out), lambda i, k: (0, 0)),
            ],
            out_specs=pl.BlockSpec((tm, f_out), lambda i, k: (i, 0)),
            scratch_shapes=[pltpu.VMEM((tm, f_in), jnp.float32)],
        ),
        compiler_params=pltpu.CompilerParams(
            # Row axis shards across TensorCores (v7x megacore); K axis is the
            # sequential reduction.
            dimension_semantics=("parallel", "arbitrary"),
            # Working set (<10 MiB at tm=512, tk=2048, F=128 bf16, double
            # buffered) fits comfortably in the 32 MiB scoped budget on every
            # generation, including v7x's halved physical VMEM.
            vmem_limit_bytes=32 * 1024 * 1024,
        ),
        cost_estimate=pl.CostEstimate(flops=flops, transcendentals=0,
                                      bytes_accessed=int(bytes_accessed)),
    )(adj, x, x, inv_deg, w_self, w_neigh, bias)


# ---------------------------------------------------------------------------
# Wrapper (padding, dtype casts, deferred normalization, two layers)
# ---------------------------------------------------------------------------

def _round_up(v, m):
    return ((v + m - 1) // m) * m


def _pad_to(a, rows, cols, dtype):
    r, c = a.shape
    return jnp.pad(a.astype(jnp.float32),
                   ((0, rows - r), (0, cols - c))).astype(dtype)


def _pick_tiles(n):
    """Graph-size-adaptive tiles; tk is always a multiple of tm."""
    if n <= 256:
        return 256, 256
    if n <= 512:
        return 512, 512
    if n <= 2048:
        return 512, 1024
    return 512, 2048


def sage_forward(adj, x, params, *, tile_m=None, tile_k=None):
    """Full SAGE forward: conv1 -> relu -> conv2 (Pallas, tiled)."""
    n, in_f = x.shape
    hid = params["w_self1"].shape[1]
    out_f = params["w_self2"].shape[1]

    if tile_m is None or tile_k is None:
        tm, tk = _pick_tiles(n)
    else:
        tm, tk = tile_m, tile_k
    n_pad = _round_up(n, (tm * tk) // math.gcd(tm, tk))
    f_in_p = _round_up(in_f, 128)
    f_hid_p = _round_up(hid, 128)
    f_out_p = _round_up(out_f, 128)

    # Deferred mean normalization: keep A as raw 0/1 (exact in bf16) and pass
    # 1/max(deg,1) as a per-row f32 vector.  Padded rows/cols are zero and
    # contribute nothing to real output rows (sliced off at the end).
    adj_f32 = adj.astype(jnp.float32)
    deg = jnp.sum(adj_f32, axis=1, keepdims=True)
    inv_deg = jnp.pad(1.0 / jnp.maximum(deg, 1.0), ((0, n_pad - n), (0, 0)))
    adj_p = _pad_to(adj_f32, n_pad, n_pad, jnp.bfloat16)

    x_p = _pad_to(x, n_pad, f_in_p, jnp.bfloat16)

    ws1 = _pad_to(params["w_self1"], f_in_p, f_hid_p, jnp.bfloat16)
    wn1 = _pad_to(params["w_neigh1"], f_in_p, f_hid_p, jnp.bfloat16)
    b1 = _pad_to(params["b1"], 1, f_hid_p, jnp.float32)
    ws2 = _pad_to(params["w_self2"], f_hid_p, f_out_p, jnp.bfloat16)
    wn2 = _pad_to(params["w_neigh2"], f_hid_p, f_out_p, jnp.bfloat16)
    b2 = _pad_to(params["b2"], 1, f_out_p, jnp.float32)

    # Layer 1 emits bf16 so layer 2 streams the activation at half the bytes;
    # the final layer emits f32.
    h = _sage_layer(adj_p, x_p, inv_deg, ws1, wn1, b1, apply_relu=True,
                    tm=tm, tk=tk, out_dtype=jnp.bfloat16)
    h = _sage_layer(adj_p, h, inv_deg, ws2, wn2, b2, apply_relu=False,
                    tm=tm, tk=tk, out_dtype=jnp.float32)
    return h[:n, :out_f]


# ---------------------------------------------------------------------------
# Test harness
# ---------------------------------------------------------------------------

def init_params(key, in_feats, hid_feats, out_feats):
    k1, k2, k3, k4 = jax.random.split(key, 4)
    s1 = 1.0 / jnp.sqrt(jnp.float32(in_feats))
    s2 = 1.0 / jnp.sqrt(jnp.float32(hid_feats))
    return {
        "w_self1":  s1 * jax.random.normal(k1, (in_feats, hid_feats), jnp.float32),
        "w_neigh1": s1 * jax.random.normal(k2, (in_feats, hid_feats), jnp.float32),
        "b1":       jnp.zeros((1, hid_feats), jnp.float32),
        "w_self2":  s2 * jax.random.normal(k3, (hid_feats, out_feats), jnp.float32),
        "w_neigh2": s2 * jax.random.normal(k4, (hid_feats, out_feats), jnp.float32),
        "b2":       jnp.zeros((1, out_feats), jnp.float32),
    }


def build_graph(key, n_nodes):
    """Ring edges plus a few random edges, as a dense adjacency matrix."""
    src = jnp.arange(n_nodes)
    dst = (src + 1) % n_nodes
    adj = jnp.zeros((n_nodes, n_nodes), jnp.float32)
    adj = adj.at[dst, src].set(1.0)
    ks, kd = jax.random.split(key)
    rsrc = jax.random.randint(ks, (n_nodes,), 0, n_nodes)
    rdst = jax.random.randint(kd, (n_nodes,), 0, n_nodes)
    adj = adj.at[rdst, rsrc].set(1.0)
    adj = adj * (1.0 - jnp.eye(n_nodes, dtype=jnp.float32))  # no self-loops
    return adj


def reference_forward(adj, x, params):
    """Pure-JAX f32 reference of the same math."""
    def layer(a, h, ws, wn, b):
        deg = jnp.sum(a, axis=1, keepdims=True)
        neigh = jnp.where(deg > 0, (a @ h) / jnp.maximum(deg, 1.0), 0.0)
        return h @ ws + neigh @ wn + b
    h = layer(adj, x, params["w_self1"], params["w_neigh1"], params["b1"])
    h = jnp.maximum(h, 0.0)
    return layer(adj, h, params["w_self2"], params["w_neigh2"], params["b2"])


def _rel_err(a, b):
    return float(jnp.max(jnp.abs(a - b)) / (jnp.max(jnp.abs(b)) + 1e-6))


if __name__ == "__main__":
    IN_FEATS, HID_FEATS, OUT_FEATS = 8, 32, 16
    key = jax.random.PRNGKey(0)
    k_x, k_g, k_p, k_x2, k_g2 = jax.random.split(key, 5)
    params = init_params(k_p, IN_FEATS, HID_FEATS, OUT_FEATS)

    # --- Test 1: tiny graph (single-tile grid), includes a zero-in-degree node.
    N = 16
    x = jax.random.normal(k_x, (N, IN_FEATS), jnp.float32)
    adj = build_graph(k_g, N)
    adj = adj.at[3, :].set(0.0)  # node with no in-neighbors

    out = jax.block_until_ready(sage_forward(adj, x, params))
    ref = reference_forward(adj, x, params)
    assert out.shape == (N, OUT_FEATS)
    assert _rel_err(out, ref) < 3e-2, _rel_err(out, ref)

    # --- Test 2: multi-block grid (exercises K-accumulation, finalize at the
    #     last K block and multiple "parallel" row blocks).
    N2 = 600
    x2 = jax.random.normal(k_x2, (N2, IN_FEATS), jnp.float32)
    adj2 = build_graph(k_g2, N2)

    out2 = jax.block_until_ready(
        sage_forward(adj2, x2, params, tile_m=256, tile_k=256))
    ref2 = reference_forward(adj2, x2, params)
    assert out2.shape == (N2, OUT_FEATS)
    assert _rel_err(out2, ref2) < 3e-2, _rel_err(out2, ref2)

    print("KERNEL_OK")
</pallas_src>

<mosaic_0001>
module attributes {stable_mosaic.version = 11 : i64} {
  func.func @kernel(%arg0: i32, %arg1: i32, %arg2: memref<256x256xbf16, #tpu.memory_space<vmem>>, %arg3: memref<256x128xbf16, #tpu.memory_space<vmem>>, %arg4: memref<256x128xbf16, #tpu.memory_space<vmem>>, %arg5: memref<256x1xf32, #tpu.memory_space<vmem>>, %arg6: memref<128x128xbf16, #tpu.memory_space<vmem>>, %arg7: memref<128x128xbf16, #tpu.memory_space<vmem>>, %arg8: memref<1x128xf32, #tpu.memory_space<vmem>>, %arg9: memref<256x128xbf16, #tpu.memory_space<vmem>>, %arg10: memref<256x128xf32, #tpu.memory_space<vmem>>) attributes {dimension_semantics = [#tpu.dimension_semantics<parallel>, #tpu.dimension_semantics<arbitrary>], iteration_bounds = array<i64: 1, 1>, scalar_prefetch = 0 : i64, scratch_operands = 1 : i64, tpu.core_type = #tpu.core_type<tc>, window_params = [{transform_indices = @transform_0, window_bounds = array<i64: 256, 256>}, {transform_indices = @transform_1, window_bounds = array<i64: 256, 128>}, {transform_indices = @transform_2, window_bounds = array<i64: 256, 128>}, {transform_indices = @transform_3, window_bounds = array<i64: 256, 1>}, {pipeline_mode = #tpu.pipeline_mode<synchronous>, transform_indices = @transform_4, window_bounds = array<i64: 128, 128>}, {pipeline_mode = #tpu.pipeline_mode<synchronous>, transform_indices = @transform_5, window_bounds = array<i64: 128, 128>}, {pipeline_mode = #tpu.pipeline_mode<synchronous>, transform_indices = @transform_6, window_bounds = array<i64: 1, 128>}, {transform_indices = @transform_7, window_bounds = array<i64: 256, 128>}]} {
    %c0_i32 = arith.constant 0 : i32
    %0 = arith.cmpi eq, %arg1, %c0_i32 : i32
    %1 = arith.extui %0 : i1 to i32
    %c0_i32_0 = arith.constant 0 : i32
    %2 = arith.cmpi ne, %1, %c0_i32_0 : i32
    scf.if %2 {
      %cst_10 = arith.constant 0.000000e+00 : f32
      %12 = vector.broadcast %cst_10 : f32 to vector<256x128xf32>
      %c0_11 = arith.constant 0 : index
      %c0_12 = arith.constant 0 : index
      %13 = vector.load %arg10[%c0_11, %c0_12] : memref<256x128xf32, #tpu.memory_space<vmem>>, vector<256x128xf32>
      tpu.vector_store %arg10[%c0_11, %c0_12], %12 {strides = array<i32>} : memref<256x128xf32, #tpu.memory_space<vmem>>, vector<256x128xf32>,
    } else {
    }
    %c0 = arith.constant 0 : index
    %c0_1 = arith.constant 0 : index
    %3 = vector.load %arg10[%c0, %c0_1] : memref<256x128xf32, #tpu.memory_space<vmem>>, vector<256x128xf32>
    %c0_2 = arith.constant 0 : index
    %c0_3 = arith.constant 0 : index
    %4 = vector.load %arg2[%c0_2, %c0_3] : memref<256x256xbf16, #tpu.memory_space<vmem>>, vector<256x256xbf16>
    %c0_4 = arith.constant 0 : index
    %c0_5 = arith.constant 0 : index
    %5 = vector.load %arg3[%c0_4, %c0_5] : memref<256x128xbf16, #tpu.memory_space<vmem>>, vector<256x128xbf16>
    %cst = arith.constant dense<0.000000e+00> : vector<256x128xf32>
    %6 = tpu.matmul %4, %5, %cst {dimension_numbers = #tpu.dot_dimension_numbers<[1], [0], [0], [1], [0, 0, 1, 1], [], []>} : vector<256x256xbf16>, vector<256x128xbf16>, vector<256x128xf32> -> vector<256x128xf32>
    %7 = arith.addf %3, %6 : vector<256x128xf32>
    %c0_6 = arith.constant 0 : index
    %c0_7 = arith.constant 0 : index
    %8 = vector.load %arg10[%c0_6, %c0_7] : memref<256x128xf32, #tpu.memory_space<vmem>>, vector<256x128xf32>
    tpu.vector_store %arg10[%c0_6, %c0_7], %7 {strides = array<i32>} : memref<256x128xf32, #tpu.memory_space<vmem>>, vector<256x128xf32>,
    %c0_i32_8 = arith.constant 0 : i32
    %9 = arith.cmpi eq, %arg1, %c0_i32_8 : i32
    %10 = arith.extui %9 : i1 to i32
    %c0_i32_9 = arith.constant 0 : i32
    %11 = arith.cmpi ne, %10, %c0_i32_9 : i32
    scf.if %11 {
      %c0_10 = arith.constant 0 : index
      %c0_11 = arith.constant 0 : index
      %12 = vector.load %arg10[%c0_10, %c0_11] : memref<256x128xf32, #tpu.memory_space<vmem>>, vector<256x128xf32>
      %c0_12 = arith.constant 0 : index
      %c0_13 = arith.constant 0 : index
      %13 = vector.load %arg5[%c0_12, %c0_13] : memref<256x1xf32, #tpu.memory_space<vmem>>, vector<256x1xf32>
      %14 = vector.broadcast %13 : vector<256x1xf32> to vector<256x128xf32>
      %15 = arith.mulf %12, %14 : vector<256x128xf32>
      %16 = arith.truncf %15 : vector<256x128xf32> to vector<256x128xbf16>
      %c0_14 = arith.constant 0 : index
      %c0_15 = arith.constant 0 : index
      %17 = vector.load %arg4[%c0_14, %c0_15] : memref<256x128xbf16, #tpu.memory_space<vmem>>, vector<256x128xbf16>
      %c0_16 = arith.constant 0 : index
      %c0_17 = arith.constant 0 : index
      %18 = vector.load %arg6[%c0_16, %c0_17] : memref<128x128xbf16, #tpu.memory_space<vmem>>, vector<128x128xbf16>
      %cst_18 = arith.constant dense<0.000000e+00> : vector<256x128xf32>
      %19 = tpu.matmul %17, %18, %cst_18 {dimension_numbers = #tpu.dot_dimension_numbers<[1], [0], [0], [1], [0, 0, 1, 1], [], []>} : vector<256x128xbf16>, vector<128x128xbf16>, vector<256x128xf32> -> vector<256x128xf32>
      %c0_19 = arith.constant 0 : index
      %c0_20 = arith.constant 0 : index
      %20 = vector.load %arg7[%c0_19, %c0_20] : memref<128x128xbf16, #tpu.memory_space<vmem>>, vector<128x128xbf16>
      %cst_21 = arith.constant dense<0.000000e+00> : vector<256x128xf32>
      %21 = tpu.matmul %16, %20, %cst_21 {dimension_numbers = #tpu.dot_dimension_numbers<[1], [0], [0], [1], [0, 0, 1, 1], [], []>} : vector<256x128xbf16>, vector<128x128xbf16>, vector<256x128xf32> -> vector<256x128xf32>
      %22 = arith.addf %19, %21 : vector<256x128xf32>
      %c0_22 = arith.constant 0 : index
      %c0_23 = arith.constant 0 : index
      %23 = vector.load %arg8[%c0_22, %c0_23] : memref<1x128xf32, #tpu.memory_space<vmem>>, vector<1x128xf32>
      %24 = vector.broadcast %23 : vector<1x128xf32> to vector<256x128xf32>
      %25 = arith.addf %22, %24 : vector<256x128xf32>
      %cst_24 = arith.constant 0.000000e+00 : f32
      %26 = vector.broadcast %cst_24 : f32 to vector<256x128xf32>
      %27 = arith.maximumf %25, %26 : vector<256x128xf32>
      %28 = arith.truncf %27 : vector<256x128xf32> to vector<256x128xbf16>
      %c0_25 = arith.constant 0 : index
      %c0_26 = arith.constant 0 : index
      %29 = vector.load %arg9[%c0_25, %c0_26] : memref<256x128xbf16, #tpu.memory_space<vmem>>, vector<256x128xbf16>
      tpu.vector_store %arg9[%c0_25, %c0_26], %28 {strides = array<i32>} : memref<256x128xbf16, #tpu.memory_space<vmem>>, vector<256x128xbf16>,
    } else {
    }
    return
  }
  func.func @transform_0(%arg0: i32, %arg1: i32) -> (i32, i32) {
    %c0_i32 = arith.constant 0 : i32
    return %arg0, %arg1 : i32, i32
  }
  func.func @transform_1(%arg0: i32, %arg1: i32) -> (i32, i32) {
    %c0_i32 = arith.constant 0 : i32
    %c0_i32_0 = arith.constant 0 : i32
    return %arg1, %c0_i32 : i32, i32
  }
  func.func @transform_2(%arg0: i32, %arg1: i32) -> (i32, i32) {
    %c0_i32 = arith.constant 0 : i32
    %c0_i32_0 = arith.constant 0 : i32
    return %arg0, %c0_i32 : i32, i32
  }
  func.func @transform_3(%arg0: i32, %arg1: i32) -> (i32, i32) {
    %c0_i32 = arith.constant 0 : i32
    %c0_i32_0 = arith.constant 0 : i32
    return %arg0, %c0_i32 : i32, i32
  }
  func.func @transform_4(%arg0: i32, %arg1: i32) -> (i32, i32) {
    %c0_i32 = arith.constant 0 : i32
    %c0_i32_0 = arith.constant 0 : i32
    %c0_i32_1 = arith.constant 0 : i32
    return %c0_i32, %c0_i32_0 : i32, i32
  }
  func.func @transform_5(%arg0: i32, %arg1: i32) -> (i32, i32) {
    %c0_i32 = arith.constant 0 : i32
    %c0_i32_0 = arith.constant 0 : i32
    %c0_i32_1 = arith.constant 0 : i32
    return %c0_i32, %c0_i32_0 : i32, i32
  }
  func.func @transform_6(%arg0: i32, %arg1: i32) -> (i32, i32) {
    %c0_i32 = arith.constant 0 : i32
    %c0_i32_0 = arith.constant 0 : i32
    %c0_i32_1 = arith.constant 0 : i32
    return %c0_i32, %c0_i32_0 : i32, i32
  }
  func.func @transform_7(%arg0: i32, %arg1: i32) -> (i32, i32) {
    %c0_i32 = arith.constant 0 : i32
    %c0_i32_0 = arith.constant 0 : i32
    return %arg0, %c0_i32 : i32, i32
  }
}

</mosaic_0001>

<llo_original>
// kernel: tpu_custom_call.1
$region0: #{tpu_custom_call.1}
  #allocation0 [shape = 'u32[]', space=smem, size = 0x4, offset = 0x4, fixed_abs, tag = 'smem constant byte address 0x4 - core index']
  #allocation1 [shape = 'u32[72,128]{1,0:T(1,128)}', space=vmem, size = 0x9000, scoped, tag = 'internal scratch']
  #allocation2 [shape = 'f32[256,128]{1,0:T(8,128)}', space=vmem, size = 0x20000, scoped, tag = 'scratch operand']
  %s0 = inlined_call_operand.vmem [shape: bf16[256,256], index: 0, kind: input, shape index: {}]
  %s1 = inlined_call_operand.hbm [shape: bf16[256,128], index: 1, kind: input, shape index: {}]
  %s2 = inlined_call_operand.hbm [shape: bf16[256,128], index: 2, kind: input, shape index: {}]
  %s3 = inlined_call_operand.vmem [shape: f32[256,1], index: 3, kind: input, shape index: {}]
  %s4 = inlined_call_operand.hbm [shape: bf16[128,128], index: 4, kind: input, shape index: {}]
  %s5 = inlined_call_operand.hbm [shape: bf16[128,128], index: 5, kind: input, shape index: {}]
  %s6 = inlined_call_operand.vmem [shape: f32[1,128], index: 6, kind: input, shape index: {}]
  %s7 = inlined_call_operand.hbm [shape: bf16[256,128], index: 7, kind: output, shape index: {}]
  %s8 = sld [smem:[#allocation0]]
  $region62: #{tpu_custom_call.1} parent=0
    _
  %s10 = ssub.s32 1, %s8
  %s11 = scalar_select 0, %s10, %s8
  $region1: #{tpu_custom_call.1} parent=0
    #allocation3 [shape = 'u8[65536]{0}', space=vmem, size = 0x10000, scoped, tag = 'input window, operand 1, single buffered']
    #allocation4 [shape = 's32[1]{0}', space=sflag, size = 0x4, scoped, tag = 'scoped memory for tpu_custom_call.1']
    #allocation5 [shape = 's32[1]{0}', space=sflag, size = 0x4, scoped, tag = 'scoped memory for tpu_custom_call.1']
    #allocation6 [shape = 'u8[65536]{0}', space=vmem, size = 0x10000, scoped, tag = 'input window, operand 2, single buffered']
    #allocation7 [shape = 's32[1]{0}', space=sflag, size = 0x4, scoped, tag = 'scoped memory for tpu_custom_call.1']
    #allocation8 [shape = 'u8[32768]{0}', space=vmem, size = 0x8000, scoped, tag = 'input window, operand 4, single buffered']
    #allocation9 [shape = 'u8[32768]{0}', space=vmem, size = 0x8000, scoped, tag = 'input window, operand 5, single buffered']
    #allocation10 [shape = 's32[1]{0}', space=sflag, size = 0x4, scoped, tag = 'scoped memory for tpu_custom_call.1']
    #allocation11 [shape = 'u8[65536]{0}', space=vmem, size = 0x10000, scoped, tag = 'output window, operand 0, single buffered']
    %12 = vsyncpa [#allocation4], 0
    %13 = vsyncpa [#allocation7], 0
    %14 = vsyncpa [#allocation10], 0
    %15 = vsyncpa [#allocation5], 0
    // Predicated region
    $region2: #{tpu_custom_call.1} parent=1 // pred_check
      _
    $region3: #{tpu_custom_call.1} parent=1 // pred_check_branch
      %17 = sbr.rel (0) target = $region5
    $region4: #{tpu_custom_call.1} parent=1 // pred_region
      _
    $region5: #{tpu_custom_call.1} parent=1 // pred_fallthru
      _
    // Predicated region
    $region6: #{tpu_custom_call.1} parent=1 // pred_check
      _
    $region7: #{tpu_custom_call.1} parent=1 // pred_check_branch
      %19 = sbr.rel (0) target = $region9
    $region8: #{tpu_custom_call.1} parent=1 // pred_region
      %21 = vsyncadd [#allocation4], 0
      %s22 = sshll.u32 %s1, 4
      %s23 = int_to_ptr.hbm [resolvable:$true] %s22
      %s24 = sshll.u32 [#allocation3], 4
      %s25 = int_to_ptr.vmem [resolvable:$true] %s24
      %30 = dma.hbm_to_vmem [thread:$0]  %s23, 2048, %s25, [#allocation4], 64, 64, 4
    $region9: #{tpu_custom_call.1} parent=1 // pred_fallthru
      _
    // Predicated region
    $region10: #{tpu_custom_call.1} parent=1 // pred_check
      _
    $region11: #{tpu_custom_call.1} parent=1 // pred_check_branch
      %32 = sbr.rel (0) target = $region13
    $region12: #{tpu_custom_call.1} parent=1 // pred_region
      %34 = vsyncadd [#allocation7], 0
      %s35 = sshll.u32 %s2, 4
      %s36 = int_to_ptr.hbm [resolvable:$true] %s35
      %s37 = sshll.u32 [#allocation6], 4
      %s38 = int_to_ptr.vmem [resolvable:$true] %s37
      %43 = dma.hbm_to_vmem [thread:$0]  %s36, 2048, %s38, [#allocation7], 64, 64, 4
    $region13: #{tpu_custom_call.1} parent=1 // pred_fallthru
      _
    // Predicated region
    $region14: #{tpu_custom_call.1} parent=1 // pred_check
      _
    $region15: #{tpu_custom_call.1} parent=1 // pred_check_branch
      %45 = sbr.rel (0) target = $region17
    $region16: #{tpu_custom_call.1} parent=1 // pred_region
      _
    $region17: #{tpu_custom_call.1} parent=1 // pred_fallthru
      _
    // Predicated region
    $region18: #{tpu_custom_call.1} parent=1 // pred_check
      _
    $region19: #{tpu_custom_call.1} parent=1 // pred_check_branch
      %47 = sbr.rel (0) target = $region21
    $region20: #{tpu_custom_call.1} parent=1 // pred_region
      %49 = vsyncadd [#allocation7], 0
      %s50 = sshll.u32 %s4, 4
      %s51 = int_to_ptr.hbm [resolvable:$true] %s50
      %s52 = sshll.u32 [#allocation8], 4
      %s53 = int_to_ptr.vmem [resolvable:$true] %s52
      %58 = dma.hbm_to_vmem [thread:$0]  %s51, 1024, %s53, [#allocation7], 64, 64, 4
    $region21: #{tpu_custom_call.1} parent=1 // pred_fallthru
      _
    // Predicated region
    $region22: #{tpu_custom_call.1} parent=1 // pred_check
      _
    $region23: #{tpu_custom_call.1} parent=1 // pred_check_branch
      %60 = sbr.rel (0) target = $region25
    $region24: #{tpu_custom_call.1} parent=1 // pred_region
      %62 = vsyncadd [#allocation10], 0
      %s63 = sshll.u32 %s5, 4
      %s64 = int_to_ptr.hbm [resolvable:$true] %s63
      %s65 = sshll.u32 [#allocation9], 4
      %s66 = int_to_ptr.vmem [resolvable:$true] %s65
      %71 = dma.hbm_to_vmem [thread:$0]  %s64, 1024, %s66, [#allocation10], 64, 64, 4
    $region25: #{tpu_custom_call.1} parent=1 // pred_fallthru
      _
    // Predicated region
    $region26: #{tpu_custom_call.1} parent=1 // pred_check
      _
    $region27: #{tpu_custom_call.1} parent=1 // pred_check_branch
      %73 = sbr.rel (0) target = $region29
    $region28: #{tpu_custom_call.1} parent=1 // pred_region
      _
    $region29: #{tpu_custom_call.1} parent=1 // pred_fallthru
      _
    // Predicated region
    $region30: #{tpu_custom_call.1} parent=1 // pred_check
      _
    $region31: #{tpu_custom_call.1} parent=1 // pred_check_branch
      %75 = sbr.rel (0) target = $region33
    $region32: #{tpu_custom_call.1} parent=1 // pred_region
      %77 = dma.done [#allocation4], 2048
    $region33: #{tpu_custom_call.1} parent=1 // pred_fallthru
      _
    // Predicated region
    $region34: #{tpu_custom_call.1} parent=1 // pred_check
      _
    $region35: #{tpu_custom_call.1} parent=1 // pred_check_branch
      %79 = sbr.rel (0) target = $region37
    $region36: #{tpu_custom_call.1} parent=1 // pred_region
      %81 = dma.done [#allocation7], 2048
    $region37: #{tpu_custom_call.1} parent=1 // pred_fallthru
      _
    // Predicated region
    $region38: #{tpu_custom_call.1} parent=1 // pred_check
      _
    $region39: #{tpu_custom_call.1} parent=1 // pred_check_branch
      %83 = sbr.rel (0) target = $region41
    $region40: #{tpu_custom_call.1} parent=1 // pred_region
      %85 = dma.done [#allocation7], 1024
    $region41: #{tpu_custom_call.1} parent=1 // pred_fallthru
      _
    // Predicated region
    $region42: #{tpu_custom_call.1} parent=1 // pred_check
      _
    $region43: #{tpu_custom_call.1} parent=1 // pred_check_branch
      %87 = sbr.rel (0) target = $region45
    $region44: #{tpu_custom_call.1} parent=1 // pred_region
      %89 = dma.done [#allocation10], 1024
    $region45: #{tpu_custom_call.1} parent=1 // pred_fallthru
      _
    %p90 = scmp.eq.s32.totalorder 0, 0
    // Predicated region
    $region46: #{tpu_custom_call.1} parent=1 // pred_check
      %p91 = pneg %p90
    $region47: #{tpu_custom_call.1} parent=1 // pred_check_branch
      %93 = sbr.rel (%p91) target = $region49
    $region48: #{tpu_custom_call.1} parent=1 // pred_region
      %94 = vst [vmem:[#allocation2] sm:$0xff] 0.0
      %95 = vst [vmem:[#allocation2 + $0x8] sm:$0xff] 0.0
      %96 = vst [vmem:[#allocation2 + $0x10] sm:$0xff] 0.0
      %97 = vst [vmem:[#allocation2 + $0x18] sm:$0xff] 0.0
      %98 = vst [vmem:[#allocation2 + $0x20] sm:$0xff] 0.0
      %99 = vst [vmem:[#allocation2 + $0x28] sm:$0xff] 0.0
      %100 = vst [vmem:[#allocation2 + $0x30] sm:$0xff] 0.0
      %101 = vst [vmem:[#allocation2 + $0x38] sm:$0xff] 0.0
      %102 = vst [vmem:[#allocation2 + $0x40] sm:$0xff] 0.0
      %103 = vst [vmem:[#allocation2 + $0x48] sm:$0xff] 0.0
      %104 = vst [vmem:[#allocation2 + $0x50] sm:$0xff] 0.0
      %105 = vst [vmem:[#allocation2 + $0x58] sm:$0xff] 0.0
      %106 = vst [vmem:[#allocation2 + $0x60] sm:$0xff] 0.0
      %107 = vst [vmem:[#allocation2 + $0x68] sm:$0xff] 0.0
      %108 = vst [vmem:[#allocation2 + $0x70] sm:$0xff] 0.0
      %109 = vst [vmem:[#allocation2 + $0x78] sm:$0xff] 0.0
      %110 = vst [vmem:[#allocation2 + $0x80] sm:$0xff] 0.0
      %111 = vst [vmem:[#allocation2 + $0x88] sm:$0xff] 0.0
      %112 = vst [vmem:[#allocation2 + $0x90] sm:$0xff] 0.0
      %113 = vst [vmem:[#allocation2 + $0x98] sm:$0xff] 0.0
      %114 = vst [vmem:[#allocation2 + $0xa0] sm:$0xff] 0.0
      %115 = vst [vmem:[#allocation2 + $0xa8] sm:$0xff] 0.0
      %116 = vst [vmem:[#allocation2 + $0xb0] sm:$0xff] 0.0
      %117 = vst [vmem:[#allocation2 + $0xb8] sm:$0xff] 0.0
      %118 = vst [vmem:[#allocation2 + $0xc0] sm:$0xff] 0.0
      %119 = vst [vmem:[#allocation2 + $0xc8] sm:$0xff] 0.0
      %120 = vst [vmem:[#allocation2 + $0xd0] sm:$0xff] 0.0
      %121 = vst [vmem:[#allocation2 + $0xd8] sm:$0xff] 0.0
      %122 = vst [vmem:[#allocation2 + $0xe0] sm:$0xff] 0.0
      %123 = vst [vmem:[#allocation2 + $0xe8] sm:$0xff] 0.0
      %124 = vst [vmem:[#allocation2 + $0xf0] sm:$0xff] 0.0
      %125 = vst [vmem:[#allocation2 + $0xf8] sm:$0xff] 0.0
    $region49: #{tpu_custom_call.1} parent=1 // pred_fallthru
      _
    %v126 = vld [vmem:[#allocation2] sm:$0xff]
    %v127 = vld [vmem:[#allocation2 + $0x8] sm:$0xff]
    %v128 = vld [vmem:[#allocation2 + $0x10] sm:$0xff]
    %v129 = vld [vmem:[#allocation2 + $0x18] sm:$0xff]
    %v130 = vld [vmem:[#allocation2 + $0x20] sm:$0xff]
    %v131 = vld [vmem:[#allocation2 + $0x28] sm:$0xff]
    %v132 = vld [vmem:[#allocation2 + $0x30] sm:$0xff]
    %v133 = vld [vmem:[#allocation2 + $0x38] sm:$0xff]
    %v134 = vld [vmem:[#allocation2 + $0x40] sm:$0xff]
    %v135 = vld [vmem:[#allocation2 + $0x48] sm:$0xff]
    %v136 = vld [vmem:[#allocation2 + $0x50] sm:$0xff]
    %v137 = vld [vmem:[#allocation2 + $0x58] sm:$0xff]
    %v138 = vld [vmem:[#allocation2 + $0x60] sm:$0xff]
    %v139 = vld [vmem:[#allocation2 + $0x68] sm:$0xff]
    %v140 = vld [vmem:[#allocation2 + $0x70] sm:$0xff]
    %v141 = vld [vmem:[#allocation2 + $0x78] sm:$0xff]
    %v142 = vld [vmem:[#allocation2 + $0x80] sm:$0xff]
    %v143 = vld [vmem:[#allocation2 + $0x88] sm:$0xff]
    %v144 = vld [vmem:[#allocation2 + $0x90] sm:$0xff]
    %v145 = vld [vmem:[#allocation2 + $0x98] sm:$0xff]
    %v146 = vld [vmem:[#allocation2 + $0xa0] sm:$0xff]
    %v147 = vld [vmem:[#allocation2 + $0xa8] sm:$0xff]
    %v148 = vld [vmem:[#allocation2 + $0xb0] sm:$0xff]
    %v149 = vld [vmem:[#allocation2 + $0xb8] sm:$0xff]
    %v150 = vld [vmem:[#allocation2 + $0xc0] sm:$0xff]
    %v151 = vld [vmem:[#allocation2 + $0xc8] sm:$0xff]
    %v152 = vld [vmem:[#allocation2 + $0xd0] sm:$0xff]
    %v153 = vld [vmem:[#allocation2 + $0xd8] sm:$0xff]
    %v154 = vld [vmem:[#allocation2 + $0xe0] sm:$0xff]
    %v155 = vld [vmem:[#allocation2 + $0xe8] sm:$0xff]
    %v156 = vld [vmem:[#allocation2 + $0xf0] sm:$0xff]
    %v157 = vld [vmem:[#allocation2 + $0xf8] sm:$0xff]
    %v158 = vld [vmem:[%s0] sm:$0xff]
    %v159 = vld [vmem:[%s0 + $0x8] sm:$0xff]
    %v160 = vld [vmem:[%s0 + $0x10] sm:$0xff]
    %v161 = vld [vmem:[%s0 + $0x18] sm:$0xff]
    %v162 = vld [vmem:[%s0 + $0x20] sm:$0xff]
    %v163 = vld [vmem:[%s0 + $0x28] sm:$0xff]
    %v164 = vld [vmem:[%s0 + $0x30] sm:$0xff]
    %v165 = vld [vmem:[%s0 + $0x38] sm:$0xff]
    %v166 = vld [vmem:[%s0 + $0x40] sm:$0xff]
    %v167 = vld [vmem:[%s0 + $0x48] sm:$0xff]
    %v168 = vld [vmem:[%s0 + $0x50] sm:$0xff]
    %v169 = vld [vmem:[%s0 + $0x58] sm:$0xff]
    %v170 = vld [vmem:[%s0 + $0x60] sm:$0xff]
    %v171 = vld [vmem:[%s0 + $0x68] sm:$0xff]
    %v172 = vld [vmem:[%s0 + $0x70] sm:$0xff]
    %v173 = vld [vmem:[%s0 + $0x78] sm:$0xff]
    %v174 = vld [vmem:[%s0 + $0x80] sm:$0xff]
    %v175 = vld [vmem:[%s0 + $0x88] sm:$0xff]
    %v176 = vld [vmem:[%s0 + $0x90] sm:$0xff]
    %v177 = vld [vmem:[%s0 + $0x98] sm:$0xff]
    %v178 = vld [vmem:[%s0 + $0xa0] sm:$0xff]
    %v179 = vld [vmem:[%s0 + $0xa8] sm:$0xff]
    %v180 = vld [vmem:[%s0 + $0xb0] sm:$0xff]
    %v181 = vld [vmem:[%s0 + $0xb8] sm:$0xff]
    %v182 = vld [vmem:[%s0 + $0xc0] sm:$0xff]
    %v183 = vld [vmem:[%s0 + $0xc8] sm:$0xff]
    %v184 = vld [vmem:[%s0 + $0xd0] sm:$0xff]
    %v185 = vld [vmem:[%s0 + $0xd8] sm:$0xff]
    %v186 = vld [vmem:[%s0 + $0xe0] sm:$0xff]
    %v187 = vld [vmem:[%s0 + $0xe8] sm:$0xff]
    %v188 = vld [vmem:[%s0 + $0xf0] sm:$0xff]
    %v189 = vld [vmem:[%s0 + $0xf8] sm:$0xff]
    %v190 = vld [vmem:[#allocation3] sm:$0xf]
    %v191 = vld [vmem:[#allocation3 + $0x4] sm:$0xf]
    %v192 = vld [vmem:[#allocation3 + $0x8] sm:$0xf]
    %v193 = vld [vmem:[#allocation3 + $0xc] sm:$0xf]
    %v194 = vld [vmem:[#allocation3 + $0x10] sm:$0xf]
    %v195 = vld [vmem:[#allocation3 + $0x14] sm:$0xf]
    %v196 = vld [vmem:[#allocation3 + $0x18] sm:$0xf]
    %v197 = vld [vmem:[#allocation3 + $0x1c] sm:$0xf]
    %v198 = vld [vmem:[#allocation3 + $0x20] sm:$0xf]
    %v199 = vld [vmem:[#allocation3 + $0x24] sm:$0xf]
    %v200 = vld [vmem:[#allocation3 + $0x28] sm:$0xf]
    %v201 = vld [vmem:[#allocation3 + $0x2c] sm:$0xf]
    %v202 = vld [vmem:[#allocation3 + $0x30] sm:$0xf]
    %v203 = vld [vmem:[#allocation3 + $0x34] sm:$0xf]
    %v204 = vld [vmem:[#allocation3 + $0x38] sm:$0xf]
    %v205 = vld [vmem:[#allocation3 + $0x3c] sm:$0xf]
    %v206 = vld [vmem:[#allocation3 + $0x40] sm:$0xf]
    %v207 = vld [vmem:[#allocation3 + $0x44] sm:$0xf]
    %v208 = vld [vmem:[#allocation3 + $0x48] sm:$0xf]
    %v209 = vld [vmem:[#allocation3 + $0x4c] sm:$0xf]
    %v210 = vld [vmem:[#allocation3 + $0x50] sm:$0xf]
    %v211 = vld [vmem:[#allocation3 + $0x54] sm:$0xf]
    %v212 = vld [vmem:[#allocation3 + $0x58] sm:$0xf]
    %v213 = vld [vmem:[#allocation3 + $0x5c] sm:$0xf]
    %v214 = vld [vmem:[#allocation3 + $0x60] sm:$0xf]
    %v215 = vld [vmem:[#allocation3 + $0x64] sm:$0xf]
    %v216 = vld [vmem:[#allocation3 + $0x68] sm:$0xf]
    %v217 = vld [vmem:[#allocation3 + $0x6c] sm:$0xf]
    %v218 = vld [vmem:[#allocation3 + $0x70] sm:$0xf]
    %v219 = vld [vmem:[#allocation3 + $0x74] sm:$0xf]
    %v220 = vld [vmem:[#allocation3 + $0x78] sm:$0xf]
    %v221 = vld [vmem:[#allocation3 + $0x7c] sm:$0xf]
    %v254 = vunpack.c.l.b16 %v158
    %v255 = vunpack.c.h.b16 %v158
    %v256 = vunpack.c.l.b16 %v159
    %v257 = vunpack.c.h.b16 %v159
    %v258 = vunpack.c.l.b16 %v160
    %v259 = vunpack.c.h.b16 %v160
    %v260 = vunpack.c.l.b16 %v161
    %v261 = vunpack.c.h.b16 %v161
    %v262 = vunpack.c.l.b16 %v162
    %v263 = vunpack.c.h.b16 %v162
    %v264 = vunpack.c.l.b16 %v163
    %v265 = vunpack.c.h.b16 %v163
    %v266 = vunpack.c.l.b16 %v164
    %v267 = vunpack.c.h.b16 %v164
    %v268 = vunpack.c.l.b16 %v165
    %v269 = vunpack.c.h.b16 %v165
    %v270 = vunpack.c.l.b16 %v166
    %v271 = vunpack.c.h.b16 %v166
    %v272 = vunpack.c.l.b16 %v167
    %v273 = vunpack.c.h.b16 %v167
    %v274 = vunpack.c.l.b16 %v168
    %v275 = vunpack.c.h.b16 %v168
    %v276 = vunpack.c.l.b16 %v169
    %v277 = vunpack.c.h.b16 %v169
    %v278 = vunpack.c.l.b16 %v170
    %v279 = vunpack.c.h.b16 %v170
    %v280 = vunpack.c.l.b16 %v171
    %v281 = vunpack.c.h.b16 %v171
    %v282 = vunpack.c.l.b16 %v172
    %v283 = vunpack.c.h.b16 %v172
    %v284 = vunpack.c.l.b16 %v173
    %v285 = vunpack.c.h.b16 %v173
    %v286 = vunpack.c.l.b16 %v174
    %v287 = vunpack.c.h.b16 %v174
    %v288 = vunpack.c.l.b16 %v175
    %v289 = vunpack.c.h.b16 %v175
    %v290 = vunpack.c.l.b16 %v176
    %v291 = vunpack.c.h.b16 %v176
    %v292 = vunpack.c.l.b16 %v177
    %v293 = vunpack.c.h.b16 %v177
    %v294 = vunpack.c.l.b16 %v178
    %v295 = vunpack.c.h.b16 %v178
    %v296 = vunpack.c.l.b16 %v179
    %v297 = vunpack.c.h.b16 %v179
    %v298 = vunpack.c.l.b16 %v180
    %v299 = vunpack.c.h.b16 %v180
    %v300 = vunpack.c.l.b16 %v181
    %v301 = vunpack.c.h.b16 %v181
    %v302 = vunpack.c.l.b16 %v182
    %v303 = vunpack.c.h.b16 %v182
    %v304 = vunpack.c.l.b16 %v183
    %v305 = vunpack.c.h.b16 %v183
    %v306 = vunpack.c.l.b16 %v184
    %v307 = vunpack.c.h.b16 %v184
    %v308 = vunpack.c.l.b16 %v185
    %v309 = vunpack.c.h.b16 %v185
    %v310 = vunpack.c.l.b16 %v186
    %v311 = vunpack.c.h.b16 %v186
    %v312 = vunpack.c.l.b16 %v187
    %v313 = vunpack.c.h.b16 %v187
    %v314 = vunpack.c.l.b16 %v188
    %v315 = vunpack.c.h.b16 %v188
    %v316 = vunpack.c.l.b16 %v189
    %v317 = vunpack.c.h.b16 %v189
    %v318 = vpack.c.b16 %v256, %v254
    %v319 = vpack.c.b16 %v257, %v255
    %v320 = vpack.c.b16 %v260, %v258
    %v321 = vpack.c.b16 %v261, %v259
    %v322 = vpack.c.b16 %v264, %v262
    %v323 = vpack.c.b16 %v265, %v263
    %v324 = vpack.c.b16 %v268, %v266
    %v325 = vpack.c.b16 %v269, %v267
    %v326 = vpack.c.b16 %v272, %v270
    %v327 = vpack.c.b16 %v273, %v271
    %v328 = vpack.c.b16 %v276, %v274
    %v329 = vpack.c.b16 %v277, %v275
    %v330 = vpack.c.b16 %v280, %v278
    %v331 = vpack.c.b16 %v281, %v279
    %v332 = vpack.c.b16 %v284, %v282
    %v333 = vpack.c.b16 %v285, %v283
    %v334 = vpack.c.b16 %v288, %v286
    %v335 = vpack.c.b16 %v289, %v287
    %v336 = vpack.c.b16 %v292, %v290
    %v337 = vpack.c.b16 %v293, %v291
    %v338 = vpack.c.b16 %v296, %v294
    %v339 = vpack.c.b16 %v297, %v295
    %v340 = vpack.c.b16 %v300, %v298
    %v341 = vpack.c.b16 %v301, %v299
    %v342 = vpack.c.b16 %v304, %v302
    %v343 = vpack.c.b16 %v305, %v303
    %v344 = vpack.c.b16 %v308, %v306
    %v345 = vpack.c.b16 %v309, %v307
    %v346 = vpack.c.b16 %v312, %v310
    %v347 = vpack.c.b16 %v313, %v311
    %v348 = vpack.c.b16 %v316, %v314
    %v349 = vpack.c.b16 %v317, %v315
    %v414 = vunpack.c.l.b16 %v190
    %v415 = vunpack.c.l.b16 %v191
    %v416 = vunpack.c.l.b16 %v192
    %v417 = vunpack.c.l.b16 %v193
    %v418 = vunpack.c.l.b16 %v194
    %v419 = vunpack.c.l.b16 %v195
    %v420 = vunpack.c.l.b16 %v196
    %v421 = vunpack.c.l.b16 %v197
    %v422 = vunpack.c.l.b16 %v198
    %v423 = vunpack.c.l.b16 %v199
    %v424 = vunpack.c.l.b16 %v200
    %v425 = vunpack.c.l.b16 %v201
    %v426 = vunpack.c.l.b16 %v202
    %v427 = vunpack.c.l.b16 %v203
    %v428 = vunpack.c.l.b16 %v204
    %v429 = vunpack.c.l.b16 %v205
    %v430 = vunpack.c.l.b16 %v206
    %v431 = vunpack.c.l.b16 %v207
    %v432 = vunpack.c.l.b16 %v208
    %v433 = vunpack.c.l.b16 %v209
    %v434 = vunpack.c.l.b16 %v210
    %v435 = vunpack.c.l.b16 %v211
    %v436 = vunpack.c.l.b16 %v212
    %v437 = vunpack.c.l.b16 %v213
    %v438 = vunpack.c.l.b16 %v214
    %v439 = vunpack.c.l.b16 %v215
    %v440 = vunpack.c.l.b16 %v216
    %v441 = vunpack.c.l.b16 %v217
    %v442 = vunpack.c.l.b16 %v218
    %v443 = vunpack.c.l.b16 %v219
    %v444 = vunpack.c.l.b16 %v220
    %v445 = vunpack.c.l.b16 %v221
    %v446 = vpack.c.b16 %v415, %v414
    %v447 = vpack.c.b16 %v417, %v416
    %v448 = vpack.c.b16 %v419, %v418
    %v449 = vpack.c.b16 %v421, %v420
    %v450 = vpack.c.b16 %v423, %v422
    %v451 = vpack.c.b16 %v425, %v424
    %v452 = vpack.c.b16 %v427, %v426
    %v453 = vpack.c.b16 %v429, %v428
    %v454 = vpack.c.b16 %v431, %v430
    %v455 = vpack.c.b16 %v433, %v432
    %v456 = vpack.c.b16 %v435, %v434
    %v457 = vpack.c.b16 %v437, %v436
    %v458 = vpack.c.b16 %v439, %v438
    %v459 = vpack.c.b16 %v441, %v440
    %v460 = vpack.c.b16 %v443, %v442
    %v461 = vpack.c.b16 %v445, %v444
    %478 = vmatpush.bf16.msra.mxu0 %v453
    %479 = vmatpush.bf16.msra.mxu0 %v452
    %480 = vmatpush.bf16.msra.mxu0 %v451
    %481 = vmatpush.bf16.msra.mxu0 %v450
    %482 = vmatpush.bf16.msra.mxu0 %v449
    %483 = vmatpush.bf16.msra.mxu0 %v448
    %484 = vmatpush.bf16.msra.mxu0 %v447
    %485 = vmatpush.bf16.msra.mxu0 %v446
    %486 = vmatmul.bf16.gmra.mxu0 %v318
    %v487 = vpop.f32.mrf.mxu0
    %v488 = vadd.f32 0.0, %v487
    %v489 = vpop.f32.mrf.mxu0
    %v490 = vadd.f32 0.0, %v489
    %491 = vmatmul.bf16.gmra.mxu0 %v320
    %v492 = vpop.f32.mrf.mxu0
    %v493 = vadd.f32 0.0, %v492
    %v494 = vpop.f32.mrf.mxu0
    %v495 = vadd.f32 0.0, %v494
    %496 = vmatmul.bf16.gmra.mxu0 %v322
    %v497 = vpop.f32.mrf.mxu0
    %v498 = vadd.f32 0.0, %v497
    %v499 = vpop.f32.mrf.mxu0
    %v500 = vadd.f32 0.0, %v499
    %501 = vmatmul.bf16.gmra.mxu0 %v324
    %v502 = vpop.f32.mrf.mxu0
    %v503 = vadd.f32 0.0, %v502
    %v504 = vpop.f32.mrf.mxu0
    %v505 = vadd.f32 0.0, %v504
    %506 = vmatmul.bf16.gmra.mxu0 %v326
    %v507 = vpop.f32.mrf.mxu0
    %v508 = vadd.f32 0.0, %v507
    %v509 = vpop.f32.mrf.mxu0
    %v510 = vadd.f32 0.0, %v509
    %511 = vmatmul.bf16.gmra.mxu0 %v328
    %v512 = vpop.f32.mrf.mxu0
    %v513 = vadd.f32 0.0, %v512
    %v514 = vpop.f32.mrf.mxu0
    %v515 = vadd.f32 0.0, %v514
    %516 = vmatmul.bf16.gmra.mxu0 %v330
    %v517 = vpop.f32.mrf.mxu0
    %v518 = vadd.f32 0.0, %v517
    %v519 = vpop.f32.mrf.mxu0
    %v520 = vadd.f32 0.0, %v519
    %521 = vmatmul.bf16.gmra.mxu0 %v332
    %v522 = vpop.f32.mrf.mxu0
    %v523 = vadd.f32 0.0, %v522
    %v524 = vpop.f32.mrf.mxu0
    %v525 = vadd.f32 0.0, %v524
    %526 = vmatmul.bf16.gmra.mxu0 %v334
    %v527 = vpop.f32.mrf.mxu0
    %v528 = vadd.f32 0.0, %v527
    %v529 = vpop.f32.mrf.mxu0
    %v530 = vadd.f32 0.0, %v529
    %531 = vmatmul.bf16.gmra.mxu0 %v336
    %v532 = vpop.f32.mrf.mxu0
    %v533 = vadd.f32 0.0, %v532
    %v534 = vpop.f32.mrf.mxu0
    %v535 = vadd.f32 0.0, %v534
    %536 = vmatmul.bf16.gmra.mxu0 %v338
    %v537 = vpop.f32.mrf.mxu0
    %v538 = vadd.f32 0.0, %v537
    %v539 = vpop.f32.mrf.mxu0
    %v540 = vadd.f32 0.0, %v539
    %541 = vmatmul.bf16.gmra.mxu0 %v340
    %v542 = vpop.f32.mrf.mxu0
    %v543 = vadd.f32 0.0, %v542
    %v544 = vpop.f32.mrf.mxu0
    %v545 = vadd.f32 0.0, %v544
    %546 = vmatmul.bf16.gmra.mxu0 %v342
    %v547 = vpop.f32.mrf.mxu0
    %v548 = vadd.f32 0.0, %v547
    %v549 = vpop.f32.mrf.mxu0
    %v550 = vadd.f32 0.0, %v549
    %551 = vmatmul.bf16.gmra.mxu0 %v344
    %v552 = vpop.f32.mrf.mxu0
    %v553 = vadd.f32 0.0, %v552
    %v554 = vpop.f32.mrf.mxu0
    %v555 = vadd.f32 0.0, %v554
    %556 = vmatmul.bf16.gmra.mxu0 %v346
    %v557 = vpop.f32.mrf.mxu0
    %v558 = vadd.f32 0.0, %v557
    %v559 = vpop.f32.mrf.mxu0
    %v560 = vadd.f32 0.0, %v559
    %561 = vmatmul.bf16.gmra.mxu0 %v348
    %v562 = vpop.f32.mrf.mxu0
    %v563 = vadd.f32 0.0, %v562
    %v564 = vpop.f32.mrf.mxu0
    %v565 = vadd.f32 0.0, %v564
    %566 = vdwg.mxu0
    %567 = vmatpush.bf16.msra.mxu0 %v461
    %568 = vmatpush.bf16.msra.mxu0 %v460
    %569 = vmatpush.bf16.msra.mxu0 %v459
    %570 = vmatpush.bf16.msra.mxu0 %v458
    %571 = vmatpush.bf16.msra.mxu0 %v457
    %572 = vmatpush.bf16.msra.mxu0 %v456
    %573 = vmatpush.bf16.msra.mxu0 %v455
    %574 = vmatpush.bf16.msra.mxu0 %v454
    %575 = vmatmul.bf16.gmra.mxu0 %v319
    %v576 = vpop.f32.mrf.mxu0
    %v577 = vadd.f32 %v488, %v576
    %v578 = vpop.f32.mrf.mxu0
    %v579 = vadd.f32 %v490, %v578
    %580 = vmatmul.bf16.gmra.mxu0 %v321
    %v581 = vpop.f32.mrf.mxu0
    %v582 = vadd.f32 %v493, %v581
    %v583 = vpop.f32.mrf.mxu0
    %v584 = vadd.f32 %v495, %v583
    %585 = vmatmul.bf16.gmra.mxu0 %v323
    %v586 = vpop.f32.mrf.mxu0
    %v587 = vadd.f32 %v498, %v586
    %v588 = vpop.f32.mrf.mxu0
    %v589 = vadd.f32 %v500, %v588
    %590 = vmatmul.bf16.gmra.mxu0 %v325
    %v591 = vpop.f32.mrf.mxu0
    %v592 = vadd.f32 %v503, %v591
    %v593 = vpop.f32.mrf.mxu0
    %v594 = vadd.f32 %v505, %v593
    %595 = vmatmul.bf16.gmra.mxu0 %v327
    %v596 = vpop.f32.mrf.mxu0
    %v597 = vadd.f32 %v508, %v596
    %v598 = vpop.f32.mrf.mxu0
    %v599 = vadd.f32 %v510, %v598
    %600 = vmatmul.bf16.gmra.mxu0 %v329
    %v601 = vpop.f32.mrf.mxu0
    %v602 = vadd.f32 %v513, %v601
    %v603 = vpop.f32.mrf.mxu0
    %v604 = vadd.f32 %v515, %v603
    %605 = vmatmul.bf16.gmra.mxu0 %v331
    %v606 = vpop.f32.mrf.mxu0
    %v607 = vadd.f32 %v518, %v606
    %v608 = vpop.f32.mrf.mxu0
    %v609 = vadd.f32 %v520, %v608
    %610 = vmatmul.bf16.gmra.mxu0 %v333
    %v611 = vpop.f32.mrf.mxu0
    %v612 = vadd.f32 %v523, %v611
    %v613 = vpop.f32.mrf.mxu0
    %v614 = vadd.f32 %v525, %v613
    %615 = vmatmul.bf16.gmra.mxu0 %v335
    %v616 = vpop.f32.mrf.mxu0
    %v617 = vadd.f32 %v528, %v616
    %v618 = vpop.f32.mrf.mxu0
    %v619 = vadd.f32 %v530, %v618
    %620 = vmatmul.bf16.gmra.mxu0 %v337
    %v621 = vpop.f32.mrf.mxu0
    %v622 = vadd.f32 %v533, %v621
    %v623 = vpop.f32.mrf.mxu0
    %v624 = vadd.f32 %v535, %v623
    %625 = vmatmul.bf16.gmra.mxu0 %v339
    %v626 = vpop.f32.mrf.mxu0
    %v627 = vadd.f32 %v538, %v626
    %v628 = vpop.f32.mrf.mxu0
    %v629 = vadd.f32 %v540, %v628
    %630 = vmatmul.bf16.gmra.mxu0 %v341
    %v631 = vpop.f32.mrf.mxu0
    %v632 = vadd.f32 %v543, %v631
    %v633 = vpop.f32.mrf.mxu0
    %v634 = vadd.f32 %v545, %v633
    %635 = vmatmul.bf16.gmra.mxu0 %v343
    %v636 = vpop.f32.mrf.mxu0
    %v637 = vadd.f32 %v548, %v636
    %v638 = vpop.f32.mrf.mxu0
    %v639 = vadd.f32 %v550, %v638
    %640 = vmatmul.bf16.gmra.mxu0 %v345
    %v641 = vpop.f32.mrf.mxu0
    %v642 = vadd.f32 %v553, %v641
    %v643 = vpop.f32.mrf.mxu0
    %v644 = vadd.f32 %v555, %v643
    %645 = vmatmul.bf16.gmra.mxu0 %v347
    %v646 = vpop.f32.mrf.mxu0
    %v647 = vadd.f32 %v558, %v646
    %v648 = vpop.f32.mrf.mxu0
    %v649 = vadd.f32 %v560, %v648
    %650 = vmatmul.bf16.gmra.mxu0 %v349
    %v651 = vpop.f32.mrf.mxu0
    %v652 = vadd.f32 %v563, %v651
    %v653 = vpop.f32.mrf.mxu0
    %v654 = vadd.f32 %v565, %v653
    %655 = vdwg.mxu0
    %v656 = vadd.f32 %v126, %v577
    %v657 = vadd.f32 %v127, %v579
    %v658 = vadd.f32 %v128, %v582
    %v659 = vadd.f32 %v129, %v584
    %v660 = vadd.f32 %v130, %v587
    %v661 = vadd.f32 %v131, %v589
    %v662 = vadd.f32 %v132, %v592
    %v663 = vadd.f32 %v133, %v594
    %v664 = vadd.f32 %v134, %v597
    %v665 = vadd.f32 %v135, %v599
    %v666 = vadd.f32 %v136, %v602
    %v667 = vadd.f32 %v137, %v604
    %v668 = vadd.f32 %v138, %v607
    %v669 = vadd.f32 %v139, %v609
    %v670 = vadd.f32 %v140, %v612
    %v671 = vadd.f32 %v141, %v614
    %v672 = vadd.f32 %v142, %v617
    %v673 = vadd.f32 %v143, %v619
    %v674 = vadd.f32 %v144, %v622
    %v675 = vadd.f32 %v145, %v624
    %v676 = vadd.f32 %v146, %v627
    %v677 = vadd.f32 %v147, %v629
    %v678 = vadd.f32 %v148, %v632
    %v679 = vadd.f32 %v149, %v634
    %v680 = vadd.f32 %v150, %v637
    %v681 = vadd.f32 %v151, %v639
    %v682 = vadd.f32 %v152, %v642
    %v683 = vadd.f32 %v153, %v644
    %v684 = vadd.f32 %v154, %v647
    %v685 = vadd.f32 %v155, %v649
    %v686 = vadd.f32 %v156, %v652
    %v687 = vadd.f32 %v157, %v654
    %688 = vst [vmem:[#allocation2] sm:$0xff] %v656
    %689 = vst [vmem:[#allocation2 + $0x8] sm:$0xff] %v657
    %690 = vst [vmem:[#allocation2 + $0x10] sm:$0xff] %v658
    %691 = vst [vmem:[#allocation2 + $0x18] sm:$0xff] %v659
    %692 = vst [vmem:[#allocation2 + $0x20] sm:$0xff] %v660
    %693 = vst [vmem:[#allocation2 + $0x28] sm:$0xff] %v661
    %694 = vst [vmem:[#allocation2 + $0x30] sm:$0xff] %v662
    %695 = vst [vmem:[#allocation2 + $0x38] sm:$0xff] %v663
    %696 = vst [vmem:[#allocation2 + $0x40] sm:$0xff] %v664
    %697 = vst [vmem:[#allocation2 + $0x48] sm:$0xff] %v665
    %698 = vst [vmem:[#allocation2 + $0x50] sm:$0xff] %v666
    %699 = vst [vmem:[#allocation2 + $0x58] sm:$0xff] %v667
    %700 = vst [vmem:[#allocation2 + $0x60] sm:$0xff] %v668
    %701 = vst [vmem:[#allocation2 + $0x68] sm:$0xff] %v669
    %702 = vst [vmem:[#allocation2 + $0x70] sm:$0xff] %v670
    %703 = vst [vmem:[#allocation2 + $0x78] sm:$0xff] %v671
    %704 = vst [vmem:[#allocation2 + $0x80] sm:$0xff] %v672
    %705 = vst [vmem:[#allocation2 + $0x88] sm:$0xff] %v673
    %706 = vst [vmem:[#allocation2 + $0x90] sm:$0xff] %v674
    %707 = vst [vmem:[#allocation2 + $0x98] sm:$0xff] %v675
    %708 = vst [vmem:[#allocation2 + $0xa0] sm:$0xff] %v676
    %709 = vst [vmem:[#allocation2 + $0xa8] sm:$0xff] %v677
    %710 = vst [vmem:[#allocation2 + $0xb0] sm:$0xff] %v678
    %711 = vst [vmem:[#allocation2 + $0xb8] sm:$0xff] %v679
    %712 = vst [vmem:[#allocation2 + $0xc0] sm:$0xff] %v680
    %713 = vst [vmem:[#allocation2 + $0xc8] sm:$0xff] %v681
    %714 = vst [vmem:[#allocation2 + $0xd0] sm:$0xff] %v682
    %715 = vst [vmem:[#allocation2 + $0xd8] sm:$0xff] %v683
    %716 = vst [vmem:[#allocation2 + $0xe0] sm:$0xff] %v684
    %717 = vst [vmem:[#allocation2 + $0xe8] sm:$0xff] %v685
    %718 = vst [vmem:[#allocation2 + $0xf0] sm:$0xff] %v686
    %719 = vst [vmem:[#allocation2 + $0xf8] sm:$0xff] %v687
    // Predicated region
    $region50: #{tpu_custom_call.1} parent=1 // pred_check
      %p720 = pneg %p90
    $region51: #{tpu_custom_call.1} parent=1 // pred_check_branch
      %722 = sbr.rel (%p720) target = $region53
    $region52: #{tpu_custom_call.1} parent=1 // pred_region
      %v723 = vld [vmem:[#allocation2] sm:$0xff]
      %v724 = vld [vmem:[#allocation2 + $0x8] sm:$0xff]
      %v725 = vld [vmem:[#allocation2 + $0x10] sm:$0xff]
      %v726 = vld [vmem:[#allocation2 + $0x18] sm:$0xff]
      %v727 = vld [vmem:[#allocation2 + $0x20] sm:$0xff]
      %v728 = vld [vmem:[#allocation2 + $0x28] sm:$0xff]
      %v729 = vld [vmem:[#allocation2 + $0x30] sm:$0xff]
      %v730 = vld [vmem:[#allocation2 + $0x38] sm:$0xff]
      %v731 = vld [vmem:[#allocation2 + $0x40] sm:$0xff]
      %v732 = vld [vmem:[#allocation2 + $0x48] sm:$0xff]
      %v733 = vld [vmem:[#allocation2 + $0x50] sm:$0xff]
      %v734 = vld [vmem:[#allocation2 + $0x58] sm:$0xff]
      %v735 = vld [vmem:[#allocation2 + $0x60] sm:$0xff]
      %v736 = vld [vmem:[#allocation2 + $0x68] sm:$0xff]
      %v737 = vld [vmem:[#allocation2 + $0x70] sm:$0xff]
      %v738 = vld [vmem:[#allocation2 + $0x78] sm:$0xff]
      %v739 = vld [vmem:[#allocation2 + $0x80] sm:$0xff]
      %v740 = vld [vmem:[#allocation2 + $0x88] sm:$0xff]
      %v741 = vld [vmem:[#allocation2 + $0x90] sm:$0xff]
      %v742 = vld [vmem:[#allocation2 + $0x98] sm:$0xff]
      %v743 = vld [vmem:[#allocation2 + $0xa0] sm:$0xff]
      %v744 = vld [vmem:[#allocation2 + $0xa8] sm:$0xff]
      %v745 = vld [vmem:[#allocation2 + $0xb0] sm:$0xff]
      %v746 = vld [vmem:[#allocation2 + $0xb8] sm:$0xff]
      %v747 = vld [vmem:[#allocation2 + $0xc0] sm:$0xff]
      %v748 = vld [vmem:[#allocation2 + $0xc8] sm:$0xff]
      %v749 = vld [vmem:[#allocation2 + $0xd0] sm:$0xff]
      %v750 = vld [vmem:[#allocation2 + $0xd8] sm:$0xff]
      %v751 = vld [vmem:[#allocation2 + $0xe0] sm:$0xff]
      %v752 = vld [vmem:[#allocation2 + $0xe8] sm:$0xff]
      %v753 = vld [vmem:[#allocation2 + $0xf0] sm:$0xff]
      %v754 = vld [vmem:[#allocation2 + $0xf8] sm:$0xff]
      %v755 = vld [vmem:[%s3] sm:$0xff]
      %v756 = vld [vmem:[%s3 + $0x8] sm:$0xff]
      %v757 = vld [vmem:[%s3 + $0x10] sm:$0xff]
      %v758 = vld [vmem:[%s3 + $0x18] sm:$0xff]
      %v759 = vld [vmem:[%s3 + $0x20] sm:$0xff]
      %v760 = vld [vmem:[%s3 + $0x28] sm:$0xff]
      %v761 = vld [vmem:[%s3 + $0x30] sm:$0xff]
      %v762 = vld [vmem:[%s3 + $0x38] sm:$0xff]
      %v763 = vld [vmem:[%s3 + $0x40] sm:$0xff]
      %v764 = vld [vmem:[%s3 + $0x48] sm:$0xff]
      %v765 = vld [vmem:[%s3 + $0x50] sm:$0xff]
      %v766 = vld [vmem:[%s3 + $0x58] sm:$0xff]
      %v767 = vld [vmem:[%s3 + $0x60] sm:$0xff]
      %v768 = vld [vmem:[%s3 + $0x68] sm:$0xff]
      %v769 = vld [vmem:[%s3 + $0x70] sm:$0xff]
      %v770 = vld [vmem:[%s3 + $0x78] sm:$0xff]
      %v771 = vld [vmem:[%s3 + $0x80] sm:$0xff]
      %v772 = vld [vmem:[%s3 + $0x88] sm:$0xff]
      %v773 = vld [vmem:[%s3 + $0x90] sm:$0xff]
      %v774 = vld [vmem:[%s3 + $0x98] sm:$0xff]
      %v775 = vld [vmem:[%s3 + $0xa0] sm:$0xff]
      %v776 = vld [vmem:[%s3 + $0xa8] sm:$0xff]
      %v777 = vld [vmem:[%s3 + $0xb0] sm:$0xff]
      %v778 = vld [vmem:[%s3 + $0xb8] sm:$0xff]
      %v779 = vld [vmem:[%s3 + $0xc0] sm:$0xff]
      %v780 = vld [vmem:[%s3 + $0xc8] sm:$0xff]
      %v781 = vld [vmem:[%s3 + $0xd0] sm:$0xff]
      %v782 = vld [vmem:[%s3 + $0xd8] sm:$0xff]
      %v783 = vld [vmem:[%s3 + $0xe0] sm:$0xff]
      %v784 = vld [vmem:[%s3 + $0xe8] sm:$0xff]
      %v785 = vld [vmem:[%s3 + $0xf0] sm:$0xff]
      %v786 = vld [vmem:[%s3 + $0xf8] sm:$0xff]
      %788 = vset.pattern.permute.xlu0 0
      %789 = vperm.xlu0 %788, %v755
      %v790 = vpop.permute.xlu0 %789
      %793 = vset.pattern.permute.xlu0 0
      %794 = vperm.xlu0 %793, %v756
      %v795 = vpop.permute.xlu0 %794
      %798 = vset.pattern.permute.xlu0 0
      %799 = vperm.xlu0 %798, %v757
      %v800 = vpop.permute.xlu0 %799
      %803 = vset.pattern.permute.xlu0 0
      %804 = vperm.xlu0 %803, %v758
      %v805 = vpop.permute.xlu0 %804
      %808 = vset.pattern.permute.xlu0 0
      %809 = vperm.xlu0 %808, %v759
      %v810 = vpop.permute.xlu0 %809
      %813 = vset.pattern.permute.xlu0 0
      %814 = vperm.xlu0 %813, %v760
      %v815 = vpop.permute.xlu0 %814
      %818 = vset.pattern.permute.xlu0 0
      %819 = vperm.xlu0 %818, %v761
      %v820 = vpop.permute.xlu0 %819
      %823 = vset.pattern.permute.xlu0 0
      %824 = vperm.xlu0 %823, %v762
      %v825 = vpop.permute.xlu0 %824
      %828 = vset.pattern.permute.xlu0 0
      %829 = vperm.xlu0 %828, %v763
      %v830 = vpop.permute.xlu0 %829
      %833 = vset.pattern.permute.xlu0 0
      %834 = vperm.xlu0 %833, %v764
      %v835 = vpop.permute.xlu0 %834
      %838 = vset.pattern.permute.xlu0 0
      %839 = vperm.xlu0 %838, %v765
      %v840 = vpop.permute.xlu0 %839
      %843 = vset.pattern.permute.xlu0 0
      %844 = vperm.xlu0 %843, %v766
      %v845 = vpop.permute.xlu0 %844
      %848 = vset.pattern.permute.xlu0 0
      %849 = vperm.xlu0 %848, %v767
      %v850 = vpop.permute.xlu0 %849
      %853 = vset.pattern.permute.xlu0 0
      %854 = vperm.xlu0 %853, %v768
      %v855 = vpop.permute.xlu0 %854
      %858 = vset.pattern.permute.xlu0 0
      %859 = vperm.xlu0 %858, %v769
      %v860 = vpop.permute.xlu0 %859
      %863 = vset.pattern.permute.xlu0 0
      %864 = vperm.xlu0 %863, %v770
      %v865 = vpop.permute.xlu0 %864
      %868 = vset.pattern.permute.xlu0 0
      %869 = vperm.xlu0 %868, %v771
      %v870 = vpop.permute.xlu0 %869
      %873 = vset.pattern.permute.xlu0 0
      %874 = vperm.xlu0 %873, %v772
      %v875 = vpop.permute.xlu0 %874
      %878 = vset.pattern.permute.xlu0 0
      %879 = vperm.xlu0 %878, %v773
      %v880 = vpop.permute.xlu0 %879
      %883 = vset.pattern.permute.xlu0 0
      %884 = vperm.xlu0 %883, %v774
      %v885 = vpop.permute.xlu0 %884
      %888 = vset.pattern.permute.xlu0 0
      %889 = vperm.xlu0 %888, %v775
      %v890 = vpop.permute.xlu0 %889
      %893 = vset.pattern.permute.xlu0 0
      %894 = vperm.xlu0 %893, %v776
      %v895 = vpop.permute.xlu0 %894
      %898 = vset.pattern.permute.xlu0 0
      %899 = vperm.xlu0 %898, %v777
      %v900 = vpop.permute.xlu0 %899
      %903 = vset.pattern.permute.xlu0 0
      %904 = vperm.xlu0 %903, %v778
      %v905 = vpop.permute.xlu0 %904
      %908 = vset.pattern.permute.xlu0 0
      %909 = vperm.xlu0 %908, %v779
      %v910 = vpop.permute.xlu0 %909
      %913 = vset.pattern.permute.xlu0 0
      %914 = vperm.xlu0 %913, %v780
      %v915 = vpop.permute.xlu0 %914
      %918 = vset.pattern.permute.xlu0 0
      %919 = vperm.xlu0 %918, %v781
      %v920 = vpop.permute.xlu0 %919
      %923 = vset.pattern.permute.xlu0 0
      %924 = vperm.xlu0 %923, %v782
      %v925 = vpop.permute.xlu0 %924
      %928 = vset.pattern.permute.xlu0 0
      %929 = vperm.xlu0 %928, %v783
      %v930 = vpop.permute.xlu0 %929
      %933 = vset.pattern.permute.xlu0 0
      %934 = vperm.xlu0 %933, %v784
      %v935 = vpop.permute.xlu0 %934
      %938 = vset.pattern.permute.xlu0 0
      %939 = vperm.xlu0 %938, %v785
      %v940 = vpop.permute.xlu0 %939
      %943 = vset.pattern.permute.xlu0 0
      %944 = vperm.xlu0 %943, %v786
      %v945 = vpop.permute.xlu0 %944
      %v947 = vmul.f32 %v723, %v790
      %v948 = vmul.f32 %v724, %v795
      %v949 = vmul.f32 %v725, %v800
      %v950 = vmul.f32 %v726, %v805
      %v951 = vmul.f32 %v727, %v810
      %v952 = vmul.f32 %v728, %v815
      %v953 = vmul.f32 %v729, %v820
      %v954 = vmul.f32 %v730, %v825
      %v955 = vmul.f32 %v731, %v830
      %v956 = vmul.f32 %v732, %v835
      %v957 = vmul.f32 %v733, %v840
      %v958 = vmul.f32 %v734, %v845
      %v959 = vmul.f32 %v735, %v850
      %v960 = vmul.f32 %v736, %v855
      %v961 = vmul.f32 %v737, %v860
      %v962 = vmul.f32 %v738, %v865
      %v963 = vmul.f32 %v739, %v870
      %v964 = vmul.f32 %v740, %v875
      %v965 = vmul.f32 %v741, %v880
      %v966 = vmul.f32 %v742, %v885
      %v967 = vmul.f32 %v743, %v890
      %v968 = vmul.f32 %v744, %v895
      %v969 = vmul.f32 %v745, %v900
      %v970 = vmul.f32 %v746, %v905
      %v971 = vmul.f32 %v747, %v910
      %v972 = vmul.f32 %v748, %v915
      %v973 = vmul.f32 %v749, %v920
      %v974 = vmul.f32 %v750, %v925
      %v975 = vmul.f32 %v751, %v930
      %v976 = vmul.f32 %v752, %v935
      %v977 = vmul.f32 %v753, %v940
      %v978 = vmul.f32 %v754, %v945
      %v979 = vpack.c.bf16 %v948, %v947
      %v980 = vpack.c.bf16 %v950, %v949
      %v981 = vpack.c.bf16 %v952, %v951
      %v982 = vpack.c.bf16 %v954, %v953
      %v983 = vpack.c.bf16 %v956, %v955
      %v984 = vpack.c.bf16 %v958, %v957
      %v985 = vpack.c.bf16 %v960, %v959
      %v986 = vpack.c.bf16 %v962, %v961
      %v987 = vpack.c.bf16 %v964, %v963
      %v988 = vpack.c.bf16 %v966, %v965
      %v989 = vpack.c.bf16 %v968, %v967
      %v990 = vpack.c.bf16 %v970, %v969
      %v991 = vpack.c.bf16 %v972, %v971
      %v992 = vpack.c.bf16 %v974, %v973
      %v993 = vpack.c.bf16 %v976, %v975
      %v994 = vpack.c.bf16 %v978, %v977
      %v995 = vld [vmem:[#allocation6] sm:$0xf]
      %v996 = vld [vmem:[#allocation6 + $0x4] sm:$0xf]
      %v997 = vld [vmem:[#allocation6 + $0x8] sm:$0xf]
      %v998 = vld [vmem:[#allocation6 + $0xc] sm:$0xf]
      %v999 = vld [vmem:[#allocation6 + $0x10] sm:$0xf]
      %v1000 = vld [vmem:[#allocation6 + $0x14] sm:$0xf]
      %v1001 = vld [vmem:[#allocation6 + $0x18] sm:$0xf]
      %v1002 = vld [vmem:[#allocation6 + $0x1c] sm:$0xf]
      %v1003 = vld [vmem:[#allocation6 + $0x20] sm:$0xf]
      %v1004 = vld [vmem:[#allocation6 + $0x24] sm:$0xf]
      %v1005 = vld [vmem:[#allocation6 + $0x28] sm:$0xf]
      %v1006 = vld [vmem:[#allocation6 + $0x2c] sm:$0xf]
      %v1007 = vld [vmem:[#allocation6 + $0x30] sm:$0xf]
      %v1008 = vld [vmem:[#allocation6 + $0x34] sm:$0xf]
      %v1009 = vld [vmem:[#allocation6 + $0x38] sm:$0xf]
      %v1010 = vld [vmem:[#allocation6 + $0x3c] sm:$0xf]
      %v1011 = vld [vmem:[#allocation6 + $0x40] sm:$0xf]
      %v1012 = vld [vmem:[#allocation6 + $0x44] sm:$0xf]
      %v1013 = vld [vmem:[#allocation6 + $0x48] sm:$0xf]
      %v1014 = vld [vmem:[#allocation6 + $0x4c] sm:$0xf]
      %v1015 = vld [vmem:[#allocation6 + $0x50] sm:$0xf]
      %v1016 = vld [vmem:[#allocation6 + $0x54] sm:$0xf]
      %v1017 = vld [vmem:[#allocation6 + $0x58] sm:$0xf]
      %v1018 = vld [vmem:[#allocation6 + $0x5c] sm:$0xf]
      %v1019 = vld [vmem:[#allocation6 + $0x60] sm:$0xf]
      %v1020 = vld [vmem:[#allocation6 + $0x64] sm:$0xf]
      %v1021 = vld [vmem:[#allocation6 + $0x68] sm:$0xf]
      %v1022 = vld [vmem:[#allocation6 + $0x6c] sm:$0xf]
      %v1023 = vld [vmem:[#allocation6 + $0x70] sm:$0xf]
      %v1024 = vld [vmem:[#allocation6 + $0x74] sm:$0xf]
      %v1025 = vld [vmem:[#allocation6 + $0x78] sm:$0xf]
      %v1026 = vld [vmem:[#allocation6 + $0x7c] sm:$0xf]
      %v1027 = vld [vmem:[#allocation8] sm:$0xf]
      %v1028 = vld [vmem:[#allocation8 + $0x4] sm:$0xf]
      %v1029 = vld [vmem:[#allocation8 + $0x8] sm:$0xf]
      %v1030 = vld [vmem:[#allocation8 + $0xc] sm:$0xf]
      %v1031 = vld [vmem:[#allocation8 + $0x10] sm:$0xf]
      %v1032 = vld [vmem:[#allocation8 + $0x14] sm:$0xf]
      %v1033 = vld [vmem:[#allocation8 + $0x18] sm:$0xf]
      %v1034 = vld [vmem:[#allocation8 + $0x1c] sm:$0xf]
      %v1035 = vld [vmem:[#allocation8 + $0x20] sm:$0xf]
      %v1036 = vld [vmem:[#allocation8 + $0x24] sm:$0xf]
      %v1037 = vld [vmem:[#allocation8 + $0x28] sm:$0xf]
      %v1038 = vld [vmem:[#allocation8 + $0x2c] sm:$0xf]
      %v1039 = vld [vmem:[#allocation8 + $0x30] sm:$0xf]
      %v1040 = vld [vmem:[#allocation8 + $0x34] sm:$0xf]
      %v1041 = vld [vmem:[#allocation8 + $0x38] sm:$0xf]
      %v1042 = vld [vmem:[#allocation8 + $0x3c] sm:$0xf]
      %v1043 = vld [vmem:[#allocation9] sm:$0xf]
      %v1044 = vld [vmem:[#allocation9 + $0x4] sm:$0xf]
      %v1045 = vld [vmem:[#allocation9 + $0x8] sm:$0xf]
      %v1046 = vld [vmem:[#allocation9 + $0xc] sm:$0xf]
      %v1047 = vld [vmem:[#allocation9 + $0x10] sm:$0xf]
      %v1048 = vld [vmem:[#allocation9 + $0x14] sm:$0xf]
      %v1049 = vld [vmem:[#allocation9 + $0x18] sm:$0xf]
      %v1050 = vld [vmem:[#allocation9 + $0x1c] sm:$0xf]
      %v1051 = vld [vmem:[#allocation9 + $0x20] sm:$0xf]
      %v1052 = vld [vmem:[#allocation9 + $0x24] sm:$0xf]
      %v1053 = vld [vmem:[#allocation9 + $0x28] sm:$0xf]
      %v1054 = vld [vmem:[#allocation9 + $0x2c] sm:$0xf]
      %v1055 = vld [vmem:[#allocation9 + $0x30] sm:$0xf]
      %v1056 = vld [vmem:[#allocation9 + $0x34] sm:$0xf]
      %v1057 = vld [vmem:[#allocation9 + $0x38] sm:$0xf]
      %v1058 = vld [vmem:[#allocation9 + $0x3c] sm:$0xf]
      %v1075 = vunpack.c.l.b16 %v1043
      %v1076 = vunpack.c.l.b16 %v1044
      %v1077 = vunpack.c.l.b16 %v1045
      %v1078 = vunpack.c.l.b16 %v1046
      %v1079 = vunpack.c.l.b16 %v1047
      %v1080 = vunpack.c.l.b16 %v1048
      %v1081 = vunpack.c.l.b16 %v1049
      %v1082 = vunpack.c.l.b16 %v1050
      %v1083 = vunpack.c.l.b16 %v1051
      %v1084 = vunpack.c.l.b16 %v1052
      %v1085 = vunpack.c.l.b16 %v1053
      %v1086 = vunpack.c.l.b16 %v1054
      %v1087 = vunpack.c.l.b16 %v1055
      %v1088 = vunpack.c.l.b16 %v1056
      %v1089 = vunpack.c.l.b16 %v1057
      %v1090 = vunpack.c.l.b16 %v1058
      %v1091 = vpack.c.b16 %v1076, %v1075
      %v1092 = vpack.c.b16 %v1078, %v1077
      %v1093 = vpack.c.b16 %v1080, %v1079
      %v1094 = vpack.c.b16 %v1082, %v1081
      %v1095 = vpack.c.b16 %v1084, %v1083
      %v1096 = vpack.c.b16 %v1086, %v1085
      %v1097 = vpack.c.b16 %v1088, %v1087
      %v1098 = vpack.c.b16 %v1090, %v1089
      %1107 = vmatpush.bf16.msra.mxu0 %v1098
      %1108 = vmatpush.bf16.msra.mxu0 %v1097
      %1109 = vmatpush.bf16.msra.mxu0 %v1096
      %1110 = vmatpush.bf16.msra.mxu0 %v1095
      %1111 = vmatpush.bf16.msra.mxu0 %v1094
      %1112 = vmatpush.bf16.msra.mxu0 %v1093
      %1113 = vmatpush.bf16.msra.mxu0 %v1092
      %1114 = vmatpush.bf16.msra.mxu0 %v1091
      %1115 = vmatmul.bf16.gmra.mxu0 %v979
      %v1116 = vpop.f32.mrf.mxu0
      %v1117 = vadd.f32 0.0, %v1116
      %v1118 = vpop.f32.mrf.mxu0
      %v1119 = vadd.f32 0.0, %v1118
      %1120 = vmatmul.bf16.gmra.mxu0 %v980
      %v1121 = vpop.f32.mrf.mxu0
      %v1122 = vadd.f32 0.0, %v1121
      %v1123 = vpop.f32.mrf.mxu0
      %v1124 = vadd.f32 0.0, %v1123
      %1125 = vmatmul.bf16.gmra.mxu0 %v981
      %v1126 = vpop.f32.mrf.mxu0
      %v1127 = vadd.f32 0.0, %v1126
      %v1128 = vpop.f32.mrf.mxu0
      %v1129 = vadd.f32 0.0, %v1128
      %1130 = vmatmul.bf16.gmra.mxu0 %v982
      %v1131 = vpop.f32.mrf.mxu0
      %v1132 = vadd.f32 0.0, %v1131
      %v1133 = vpop.f32.mrf.mxu0
      %v1134 = vadd.f32 0.0, %v1133
      %1135 = vmatmul.bf16.gmra.mxu0 %v983
      %v1136 = vpop.f32.mrf.mxu0
      %v1137 = vadd.f32 0.0, %v1136
      %v1138 = vpop.f32.mrf.mxu0
      %v1139 = vadd.f32 0.0, %v1138
      %1140 = vmatmul.bf16.gmra.mxu0 %v984
      %v1141 = vpop.f32.mrf.mxu0
      %v1142 = vadd.f32 0.0, %v1141
      %v1143 = vpop.f32.mrf.mxu0
      %v1144 = vadd.f32 0.0, %v1143
      %1145 = vmatmul.bf16.gmra.mxu0 %v985
      %v1146 = vpop.f32.mrf.mxu0
      %v1147 = vadd.f32 0.0, %v1146
      %v1148 = vpop.f32.mrf.mxu0
      %v1149 = vadd.f32 0.0, %v1148
      %1150 = vmatmul.bf16.gmra.mxu0 %v986
      %v1151 = vpop.f32.mrf.mxu0
      %v1152 = vadd.f32 0.0, %v1151
      %v1153 = vpop.f32.mrf.mxu0
      %v1154 = vadd.f32 0.0, %v1153
      %1155 = vmatmul.bf16.gmra.mxu0 %v987
      %v1156 = vpop.f32.mrf.mxu0
      %v1157 = vadd.f32 0.0, %v1156
      %v1158 = vpop.f32.mrf.mxu0
      %v1159 = vadd.f32 0.0, %v1158
      %1160 = vmatmul.bf16.gmra.mxu0 %v988
      %v1161 = vpop.f32.mrf.mxu0
      %v1162 = vadd.f32 0.0, %v1161
      %v1163 = vpop.f32.mrf.mxu0
      %v1164 = vadd.f32 0.0, %v1163
      %1165 = vmatmul.bf16.gmra.mxu0 %v989
      %v1166 = vpop.f32.mrf.mxu0
      %v1167 = vadd.f32 0.0, %v1166
      %v1168 = vpop.f32.mrf.mxu0
      %v1169 = vadd.f32 0.0, %v1168
      %1170 = vmatmul.bf16.gmra.mxu0 %v990
      %v1171 = vpop.f32.mrf.mxu0
      %v1172 = vadd.f32 0.0, %v1171
      %v1173 = vpop.f32.mrf.mxu0
      %v1174 = vadd.f32 0.0, %v1173
      %1175 = vmatmul.bf16.gmra.mxu0 %v991
      %v1176 = vpop.f32.mrf.mxu0
      %v1177 = vadd.f32 0.0, %v1176
      %v1178 = vpop.f32.mrf.mxu0
      %v1179 = vadd.f32 0.0, %v1178
      %1180 = vmatmul.bf16.gmra.mxu0 %v992
      %v1181 = vpop.f32.mrf.mxu0
      %v1182 = vadd.f32 0.0, %v1181
      %v1183 = vpop.f32.mrf.mxu0
      %v1184 = vadd.f32 0.0, %v1183
      %1185 = vmatmul.bf16.gmra.mxu0 %v993
      %v1186 = vpop.f32.mrf.mxu0
      %v1187 = vadd.f32 0.0, %v1186
      %v1188 = vpop.f32.mrf.mxu0
      %v1189 = vadd.f32 0.0, %v1188
      %1190 = vmatmul.bf16.gmra.mxu0 %v994
      %v1191 = vpop.f32.mrf.mxu0
      %v1192 = vadd.f32 0.0, %v1191
      %v1193 = vpop.f32.mrf.mxu0
      %v1194 = vadd.f32 0.0, %v1193
      %1195 = vdwg.mxu0
      %v1228 = vunpack.c.l.b16 %v995
      %v1229 = vunpack.c.l.b16 %v996
      %v1230 = vunpack.c.l.b16 %v997
      %v1231 = vunpack.c.l.b16 %v998
      %v1232 = vunpack.c.l.b16 %v999
      %v1233 = vunpack.c.l.b16 %v1000
      %v1234 = vunpack.c.l.b16 %v1001
      %v1235 = vunpack.c.l.b16 %v1002
      %v1236 = vunpack.c.l.b16 %v1003
      %v1237 = vunpack.c.l.b16 %v1004
      %v1238 = vunpack.c.l.b16 %v1005
      %v1239 = vunpack.c.l.b16 %v1006
      %v1240 = vunpack.c.l.b16 %v1007
      %v1241 = vunpack.c.l.b16 %v1008
      %v1242 = vunpack.c.l.b16 %v1009
      %v1243 = vunpack.c.l.b16 %v1010
      %v1244 = vunpack.c.l.b16 %v1011
      %v1245 = vunpack.c.l.b16 %v1012
      %v1246 = vunpack.c.l.b16 %v1013
      %v1247 = vunpack.c.l.b16 %v1014
      %v1248 = vunpack.c.l.b16 %v1015
      %v1249 = vunpack.c.l.b16 %v1016
      %v1250 = vunpack.c.l.b16 %v1017
      %v1251 = vunpack.c.l.b16 %v1018
      %v1252 = vunpack.c.l.b16 %v1019
      %v1253 = vunpack.c.l.b16 %v1020
      %v1254 = vunpack.c.l.b16 %v1021
      %v1255 = vunpack.c.l.b16 %v1022
      %v1256 = vunpack.c.l.b16 %v1023
      %v1257 = vunpack.c.l.b16 %v1024
      %v1258 = vunpack.c.l.b16 %v1025
      %v1259 = vunpack.c.l.b16 %v1026
      %v1260 = vpack.c.b16 %v1229, %v1228
      %v1261 = vpack.c.b16 %v1231, %v1230
      %v1262 = vpack.c.b16 %v1233, %v1232
      %v1263 = vpack.c.b16 %v1235, %v1234
      %v1264 = vpack.c.b16 %v1237, %v1236
      %v1265 = vpack.c.b16 %v1239, %v1238
      %v1266 = vpack.c.b16 %v1241, %v1240
      %v1267 = vpack.c.b16 %v1243, %v1242
      %v1268 = vpack.c.b16 %v1245, %v1244
      %v1269 = vpack.c.b16 %v1247, %v1246
      %v1270 = vpack.c.b16 %v1249, %v1248
      %v1271 = vpack.c.b16 %v1251, %v1250
      %v1272 = vpack.c.b16 %v1253, %v1252
      %v1273 = vpack.c.b16 %v1255, %v1254
      %v1274 = vpack.c.b16 %v1257, %v1256
      %v1275 = vpack.c.b16 %v1259, %v1258
      %v1308 = vunpack.c.l.b16 %v1027
      %v1309 = vunpack.c.l.b16 %v1028
      %v1310 = vunpack.c.l.b16 %v1029
      %v1311 = vunpack.c.l.b16 %v1030
      %v1312 = vunpack.c.l.b16 %v1031
      %v1313 = vunpack.c.l.b16 %v1032
      %v1314 = vunpack.c.l.b16 %v1033
      %v1315 = vunpack.c.l.b16 %v1034
      %v1316 = vunpack.c.l.b16 %v1035
      %v1317 = vunpack.c.l.b16 %v1036
      %v1318 = vunpack.c.l.b16 %v1037
      %v1319 = vunpack.c.l.b16 %v1038
      %v1320 = vunpack.c.l.b16 %v1039
      %v1321 = vunpack.c.l.b16 %v1040
      %v1322 = vunpack.c.l.b16 %v1041
      %v1323 = vunpack.c.l.b16 %v1042
      %v1324 = vpack.c.b16 %v1309, %v1308
      %v1325 = vpack.c.b16 %v1311, %v1310
      %v1326 = vpack.c.b16 %v1313, %v1312
      %v1327 = vpack.c.b16 %v1315, %v1314
      %v1328 = vpack.c.b16 %v1317, %v1316
      %v1329 = vpack.c.b16 %v1319, %v1318
      %v1330 = vpack.c.b16 %v1321, %v1320
      %v1331 = vpack.c.b16 %v1323, %v1322
      %1340 = vmatpush.bf16.msra.mxu0 %v1331
      %1341 = vmatpush.bf16.msra.mxu0 %v1330
      %1342 = vmatpush.bf16.msra.mxu0 %v1329
      %1343 = vmatpush.bf16.msra.mxu0 %v1328
      %1344 = vmatpush.bf16.msra.mxu0 %v1327
      %1345 = vmatpush.bf16.msra.mxu0 %v1326
      %1346 = vmatpush.bf16.msra.mxu0 %v1325
      %1347 = vmatpush.bf16.msra.mxu0 %v1324
      %1348 = vmatmul.bf16.gmra.mxu0 %v1260
      %v1349 = vpop.f32.mrf.mxu0
      %v1350 = vadd.f32 %v1117, %v1349
      %v1351 = vpop.f32.mrf.mxu0
      %v1352 = vadd.f32 %v1119, %v1351
      %1353 = vmatmul.bf16.gmra.mxu0 %v1261
      %v1354 = vpop.f32.mrf.mxu0
      %v1355 = vadd.f32 %v1122, %v1354
      %v1356 = vpop.f32.mrf.mxu0
      %v1357 = vadd.f32 %v1124, %v1356
      %1358 = vmatmul.bf16.gmra.mxu0 %v1262
      %v1359 = vpop.f32.mrf.mxu0
      %v1360 = vadd.f32 %v1127, %v1359
      %v1361 = vpop.f32.mrf.mxu0
      %v1362 = vadd.f32 %v1129, %v1361
      %1363 = vmatmul.bf16.gmra.mxu0 %v1263
      %v1364 = vpop.f32.mrf.mxu0
      %v1365 = vadd.f32 %v1132, %v1364
      %v1366 = vpop.f32.mrf.mxu0
      %v1367 = vadd.f32 %v1134, %v1366
      %1368 = vmatmul.bf16.gmra.mxu0 %v1264
      %v1369 = vpop.f32.mrf.mxu0
      %v1370 = vadd.f32 %v1137, %v1369
      %v1371 = vpop.f32.mrf.mxu0
      %v1372 = vadd.f32 %v1139, %v1371
      %1373 = vmatmul.bf16.gmra.mxu0 %v1265
      %v1374 = vpop.f32.mrf.mxu0
      %v1375 = vadd.f32 %v1142, %v1374
      %v1376 = vpop.f32.mrf.mxu0
      %v1377 = vadd.f32 %v1144, %v1376
      %1378 = vmatmul.bf16.gmra.mxu0 %v1266
      %v1379 = vpop.f32.mrf.mxu0
      %v1380 = vadd.f32 %v1147, %v1379
      %v1381 = vpop.f32.mrf.mxu0
      %v1382 = vadd.f32 %v1149, %v1381
      %1383 = vmatmul.bf16.gmra.mxu0 %v1267
      %v1384 = vpop.f32.mrf.mxu0
      %v1385 = vadd.f32 %v1152, %v1384
      %v1386 = vpop.f32.mrf.mxu0
      %v1387 = vadd.f32 %v1154, %v1386
      %1388 = vmatmul.bf16.gmra.mxu0 %v1268
      %v1389 = vpop.f32.mrf.mxu0
      %v1390 = vadd.f32 %v1157, %v1389
      %v1391 = vpop.f32.mrf.mxu0
      %v1392 = vadd.f32 %v1159, %v1391
      %1393 = vmatmul.bf16.gmra.mxu0 %v1269
      %v1394 = vpop.f32.mrf.mxu0
      %v1395 = vadd.f32 %v1162, %v1394
      %v1396 = vpop.f32.mrf.mxu0
      %v1397 = vadd.f32 %v1164, %v1396
      %1398 = vmatmul.bf16.gmra.mxu0 %v1270
      %v1399 = vpop.f32.mrf.mxu0
      %v1400 = vadd.f32 %v1167, %v1399
      %v1401 = vpop.f32.mrf.mxu0
      %v1402 = vadd.f32 %v1169, %v1401
      %1403 = vmatmul.bf16.gmra.mxu0 %v1271
      %v1404 = vpop.f32.mrf.mxu0
      %v1405 = vadd.f32 %v1172, %v1404
      %v1406 = vpop.f32.mrf.mxu0
      %v1407 = vadd.f32 %v1174, %v1406
      %1408 = vmatmul.bf16.gmra.mxu0 %v1272
      %v1409 = vpop.f32.mrf.mxu0
      %v1410 = vadd.f32 %v1177, %v1409
      %v1411 = vpop.f32.mrf.mxu0
      %v1412 = vadd.f32 %v1179, %v1411
      %1413 = vmatmul.bf16.gmra.mxu0 %v1273
      %v1414 = vpop.f32.mrf.mxu0
      %v1415 = vadd.f32 %v1182, %v1414
      %v1416 = vpop.f32.mrf.mxu0
      %v1417 = vadd.f32 %v1184, %v1416
      %1418 = vmatmul.bf16.gmra.mxu0 %v1274
      %v1419 = vpop.f32.mrf.mxu0
      %v1420 = vadd.f32 %v1187, %v1419
      %v1421 = vpop.f32.mrf.mxu0
      %v1422 = vadd.f32 %v1189, %v1421
      %1423 = vmatmul.bf16.gmra.mxu0 %v1275
      %v1424 = vpop.f32.mrf.mxu0
      %v1425 = vadd.f32 %v1192, %v1424
      %v1426 = vpop.f32.mrf.mxu0
      %v1427 = vadd.f32 %v1194, %v1426
      %1428 = vdwg.mxu0
      %v1429 = vld [vmem:[%s6] sm:$0x1]
      %v1431 = vperm.slane %v1429, 0
      %v1433 = vadd.f32 %v1350, %v1431
      %v1434 = vadd.f32 %v1352, %v1431
      %v1435 = vadd.f32 %v1355, %v1431
      %v1436 = vadd.f32 %v1357, %v1431
      %v1437 = vadd.f32 %v1360, %v1431
      %v1438 = vadd.f32 %v1362, %v1431
      %v1439 = vadd.f32 %v1365, %v1431
      %v1440 = vadd.f32 %v1367, %v1431
      %v1441 = vadd.f32 %v1370, %v1431
      %v1442 = vadd.f32 %v1372, %v1431
      %v1443 = vadd.f32 %v1375, %v1431
      %v1444 = vadd.f32 %v1377, %v1431
      %v1445 = vadd.f32 %v1380, %v1431
      %v1446 = vadd.f32 %v1382, %v1431
      %v1447 = vadd.f32 %v1385, %v1431
      %v1448 = vadd.f32 %v1387, %v1431
      %v1449 = vadd.f32 %v1390, %v1431
      %v1450 = vadd.f32 %v1392, %v1431
      %v1451 = vadd.f32 %v1395, %v1431
      %v1452 = vadd.f32 %v1397, %v1431
      %v1453 = vadd.f32 %v1400, %v1431
      %v1454 = vadd.f32 %v1402, %v1431
      %v1455 = vadd.f32 %v1405, %v1431
      %v1456 = vadd.f32 %v1407, %v1431
      %v1457 = vadd.f32 %v1410, %v1431
      %v1458 = vadd.f32 %v1412, %v1431
      %v1459 = vadd.f32 %v1415, %v1431
      %v1460 = vadd.f32 %v1417, %v1431
      %v1461 = vadd.f32 %v1420, %v1431
      %v1462 = vadd.f32 %v1422, %v1431
      %v1463 = vadd.f32 %v1425, %v1431
      %v1464 = vadd.f32 %v1427, %v1431
      %v1465 = vmax.f32 %v1433, 0.0
      %v1466 = vmax.f32 %v1434, 0.0
      %v1467 = vmax.f32 %v1435, 0.0
      %v1468 = vmax.f32 %v1436, 0.0
      %v1469 = vmax.f32 %v1437, 0.0
      %v1470 = vmax.f32 %v1438, 0.0
      %v1471 = vmax.f32 %v1439, 0.0
      %v1472 = vmax.f32 %v1440, 0.0
      %v1473 = vmax.f32 %v1441, 0.0
      %v1474 = vmax.f32 %v1442, 0.0
      %v1475 = vmax.f32 %v1443, 0.0
      %v1476 = vmax.f32 %v1444, 0.0
      %v1477 = vmax.f32 %v1445, 0.0
      %v1478 = vmax.f32 %v1446, 0.0
      %v1479 = vmax.f32 %v1447, 0.0
      %v1480 = vmax.f32 %v1448, 0.0
      %v1481 = vmax.f32 %v1449, 0.0
      %v1482 = vmax.f32 %v1450, 0.0
      %v1483 = vmax.f32 %v1451, 0.0
      %v1484 = vmax.f32 %v1452, 0.0
      %v1485 = vmax.f32 %v1453, 0.0
      %v1486 = vmax.f32 %v1454, 0.0
      %v1487 = vmax.f32 %v1455, 0.0
      %v1488 = vmax.f32 %v1456, 0.0
      %v1489 = vmax.f32 %v1457, 0.0
      %v1490 = vmax.f32 %v1458, 0.0
      %v1491 = vmax.f32 %v1459, 0.0
      %v1492 = vmax.f32 %v1460, 0.0
      %v1493 = vmax.f32 %v1461, 0.0
      %v1494 = vmax.f32 %v1462, 0.0
      %v1495 = vmax.f32 %v1463, 0.0
      %v1496 = vmax.f32 %v1464, 0.0
      %v1497 = vpack.c.bf16 %v1465, %v1465
      %v1498 = vpack.c.bf16 %v1466, %v1466
      %v1499 = vpack.c.bf16 %v1467, %v1467
      %v1500 = vpack.c.bf16 %v1468, %v1468
      %v1501 = vpack.c.bf16 %v1469, %v1469
      %v1502 = vpack.c.bf16 %v1470, %v1470
      %v1503 = vpack.c.bf16 %v1471, %v1471
      %v1504 = vpack.c.bf16 %v1472, %v1472
      %v1505 = vpack.c.bf16 %v1473, %v1473
      %v1506 = vpack.c.bf16 %v1474, %v1474
      %v1507 = vpack.c.bf16 %v1475, %v1475
      %v1508 = vpack.c.bf16 %v1476, %v1476
      %v1509 = vpack.c.bf16 %v1477, %v1477
      %v1510 = vpack.c.bf16 %v1478, %v1478
      %v1511 = vpack.c.bf16 %v1479, %v1479
      %v1512 = vpack.c.bf16 %v1480, %v1480
      %v1513 = vpack.c.bf16 %v1481, %v1481
      %v1514 = vpack.c.bf16 %v1482, %v1482
      %v1515 = vpack.c.bf16 %v1483, %v1483
      %v1516 = vpack.c.bf16 %v1484, %v1484
      %v1517 = vpack.c.bf16 %v1485, %v1485
      %v1518 = vpack.c.bf16 %v1486, %v1486
      %v1519 = vpack.c.bf16 %v1487, %v1487
      %v1520 = vpack.c.bf16 %v1488, %v1488
      %v1521 = vpack.c.bf16 %v1489, %v1489
      %v1522 = vpack.c.bf16 %v1490, %v1490
      %v1523 = vpack.c.bf16 %v1491, %v1491
      %v1524 = vpack.c.bf16 %v1492, %v1492
      %v1525 = vpack.c.bf16 %v1493, %v1493
      %v1526 = vpack.c.bf16 %v1494, %v1494
      %v1527 = vpack.c.bf16 %v1495, %v1495
      %v1528 = vpack.c.bf16 %v1496, %v1496
      %1529 = vst [vmem:[#allocation11] sm:$0xf] %v1497
      %1530 = vst [vmem:[#allocation11 + $0x4] sm:$0xf] %v1498
      %1531 = vst [vmem:[#allocation11 + $0x8] sm:$0xf] %v1499
      %1532 = vst [vmem:[#allocation11 + $0xc] sm:$0xf] %v1500
      %1533 = vst [vmem:[#allocation11 + $0x10] sm:$0xf] %v1501
      %1534 = vst [vmem:[#allocation11 + $0x14] sm:$0xf] %v1502
      %1535 = vst [vmem:[#allocation11 + $0x18] sm:$0xf] %v1503
      %1536 = vst [vmem:[#allocation11 + $0x1c] sm:$0xf] %v1504
      %1537 = vst [vmem:[#allocation11 + $0x20] sm:$0xf] %v1505
      %1538 = vst [vmem:[#allocation11 + $0x24] sm:$0xf] %v1506
      %1539 = vst [vmem:[#allocation11 + $0x28] sm:$0xf] %v1507
      %1540 = vst [vmem:[#allocation11 + $0x2c] sm:$0xf] %v1508
      %1541 = vst [vmem:[#allocation11 + $0x30] sm:$0xf] %v1509
      %1542 = vst [vmem:[#allocation11 + $0x34] sm:$0xf] %v1510
      %1543 = vst [vmem:[#allocation11 + $0x38] sm:$0xf] %v1511
      %1544 = vst [vmem:[#allocation11 + $0x3c] sm:$0xf] %v1512
      %1545 = vst [vmem:[#allocation11 + $0x40] sm:$0xf] %v1513
      %1546 = vst [vmem:[#allocation11 + $0x44] sm:$0xf] %v1514
      %1547 = vst [vmem:[#allocation11 + $0x48] sm:$0xf] %v1515
      %1548 = vst [vmem:[#allocation11 + $0x4c] sm:$0xf] %v1516
      %1549 = vst [vmem:[#allocation11 + $0x50] sm:$0xf] %v1517
      %1550 = vst [vmem:[#allocation11 + $0x54] sm:$0xf] %v1518
      %1551 = vst [vmem:[#allocation11 + $0x58] sm:$0xf] %v1519
      %1552 = vst [vmem:[#allocation11 + $0x5c] sm:$0xf] %v1520
      %1553 = vst [vmem:[#allocation11 + $0x60] sm:$0xf] %v1521
      %1554 = vst [vmem:[#allocation11 + $0x64] sm:$0xf] %v1522
      %1555 = vst [vmem:[#allocation11 + $0x68] sm:$0xf] %v1523
      %1556 = vst [vmem:[#allocation11 + $0x6c] sm:$0xf] %v1524
      %1557 = vst [vmem:[#allocation11 + $0x70] sm:$0xf] %v1525
      %1558 = vst [vmem:[#allocation11 + $0x74] sm:$0xf] %v1526
      %1559 = vst [vmem:[#allocation11 + $0x78] sm:$0xf] %v1527
      %1560 = vst [vmem:[#allocation11 + $0x7c] sm:$0xf] %v1528
    $region53: #{tpu_custom_call.1} parent=1 // pred_fallthru
      _
    // Predicated region
    $region54: #{tpu_custom_call.1} parent=1 // pred_check
      _
    $region55: #{tpu_custom_call.1} parent=1 // pred_check_branch
      %1562 = sbr.rel (0) target = $region57
    $region56: #{tpu_custom_call.1} parent=1 // pred_region
      %1564 = vsyncadd [#allocation5], 0
      %s1565 = sshll.u32 [#allocation11], 4
      %s1566 = int_to_ptr.vmem [resolvable:$true] %s1565
      %s1567 = sshll.u32 %s7, 4
      %s1568 = int_to_ptr.hbm [resolvable:$true] %s1567
      %1573 = dma.vmem_to_hbm [thread:$0]  %s1566, 2048, %s1568, [#allocation5], 64, 64, 4
    $region57: #{tpu_custom_call.1} parent=1 // pred_fallthru
      _
    // Predicated region
    $region58: #{tpu_custom_call.1} parent=1 // pred_check
      _
    $region59: #{tpu_custom_call.1} parent=1 // pred_check_branch
      %1575 = sbr.rel (0) target = $region61
    $region60: #{tpu_custom_call.1} parent=1 // pred_region
      %1577 = dma.done [#allocation5], 2048
    $region61: #{tpu_custom_call.1} parent=1 // pred_fallthru
      _
    %1578 = vsyncpa [#allocation4], 1
    %1579 = vsyncpa [#allocation7], 1
    %1580 = vsyncpa [#allocation10], 1
    %1581 = vsyncpa [#allocation5], 1

</llo_original>
